<compile_context>
chip_gen: v7x
topology: tpu7x:2x2x1
jax: 0.10.0
libtpu: 0.0.40
codegen_flags: <defaults>
</compile_context>

<pallas_src>
import functools

import numpy as np

import jax
import jax.numpy as jnp
from jax.experimental import pallas as pl
from jax.experimental.pallas import tpu as pltpu

BN_EPS = 1e-5
LANE = 128
ACT_DTYPE = jnp.bfloat16      # activation storage / MXU operand dtype

_VMEM = pl.BlockSpec(memory_space=pltpu.MemorySpace.VMEM)


def _default_vmem_limit():
    """Generation-dependent VMEM budget: ~3/4 of physical (96 MiB on 128 MiB
    parts, 48 MiB on v7x); conservative fallback if the query fails."""
    try:
        info = pltpu.get_tpu_info()
        cap = getattr(info, "vmem_capacity_bytes", None)
        if cap:
            return int(min(cap * 3 // 4, 112 * 1024 * 1024))
    except Exception:
        pass
    return 48 * 1024 * 1024


VMEM_LIMIT = _default_vmem_limit()


# ---------------------------------------------------------------------------
# small helpers
# ---------------------------------------------------------------------------
def _round_up(x, m):
    return (x + m - 1) // m * m


def _pick_block(total, cap, quantum):
    """Largest divisor of `total` <= cap and a multiple of `quantum`.
    Falls back to `total` (single block) if none exists (only safe for the
    rarely-hit fallback paths)."""
    if total <= cap:
        return total
    for d in range(cap, 0, -1):
        if total % d == 0 and d % quantum == 0:
            return d
    return total


@functools.lru_cache(maxsize=None)
def _coord_arrays(n, h, w):
    """(M,1) int32 x / y output coordinates for the direct-conv border masks."""
    ys, xs = np.meshgrid(np.arange(h), np.arange(w), indexing="ij")
    xs = np.tile(xs.reshape(1, h, w), (n, 1, 1)).reshape(-1, 1).astype(np.int32)
    ys = np.tile(ys.reshape(1, h, w), (n, 1, 1)).reshape(-1, 1).astype(np.int32)
    return jnp.asarray(xs), jnp.asarray(ys)


# ---------------------------------------------------------------------------
# Pallas kernels
# ---------------------------------------------------------------------------
def _conv3x3_bn_kernel(a_ref, b_ref, xc_ref, yc_ref, g_ref, bt_ref, *rest,
                       has_res, relu, inv_m, H, W, cin):
    """Direct stride-1 3x3 conv: a_ref is the (M + 2W + 2, Cin) zero-row-padded
    flattened activation; the 9 taps are row-shifted slices masked at image
    borders; 9 MXU matmuls accumulate in f32, then BN(batch stats) [+res]
    [ReLU].  Gridded over cout blocks ("parallel")."""
    if has_res:
        res_ref, o_ref = rest
    else:
        (o_ref,) = rest
        res_ref = None

    m_rows = o_ref.shape[0]
    xc = xc_ref[...]
    yc = yc_ref[...]
    acc = jnp.zeros(o_ref.shape, jnp.float32)

    for dy in range(3):
        if H == 1 and dy != 1:      # tap entirely in the zero padding
            continue
        for dx in range(3):
            if W == 1 and dx != 1:
                continue
            off = dy * W + dx
            a = a_ref[off:off + m_rows, :]
            conds = []
            if dx == 0:
                conds.append(xc >= 1)
            elif dx == 2:
                conds.append(xc < W - 1)
            if dy == 0:
                conds.append(yc >= 1)
            elif dy == 2:
                conds.append(yc < H - 1)
            if conds:
                cond = conds[0]
                for c in conds[1:]:
                    cond = jnp.logical_and(cond, c)
                a = jnp.where(cond, a, jnp.zeros_like(a))
            wt = b_ref[(dy * 3 + dx) * cin:(dy * 3 + dx + 1) * cin, :]
            acc = acc + jnp.dot(a, wt, preferred_element_type=jnp.float32)

    mean = jnp.sum(acc, axis=0, keepdims=True) * inv_m
    var = jnp.sum(jnp.square(acc - mean), axis=0, keepdims=True) * inv_m
    out = (acc - mean) * (g_ref[...] * jax.lax.rsqrt(var + BN_EPS)) + bt_ref[...]
    if res_ref is not None:
        out = out + res_ref[...].astype(jnp.float32)
    if relu:
        out = jnp.maximum(out, 0.0)
    o_ref[...] = out.astype(o_ref.dtype)


def _mm_bn_fused_kernel(a_ref, b_ref, g_ref, bt_ref, mask_ref, *rest,
                        has_res, inv_m):
    """im2col path (single fused pass): acc += A_k @ B_k over the K grid axis;
    at the last K step apply BN (batch stats over the full M block), optional
    residual and a per-channel-masked ReLU.  Grid = (cout blocks, K blocks)."""
    if has_res:
        res_ref, o_ref, acc_ref = rest
    else:
        o_ref, acc_ref = rest
        res_ref = None

    k_i = pl.program_id(1)

    @pl.when(k_i == 0)
    def _():
        acc_ref[...] = jnp.zeros_like(acc_ref)

    acc_ref[...] += jnp.dot(a_ref[...], b_ref[...],
                            preferred_element_type=jnp.float32)

    @pl.when(k_i == pl.num_programs(1) - 1)
    def _():
        acc = acc_ref[...]
        mean = jnp.sum(acc, axis=0, keepdims=True) * inv_m
        var = jnp.sum(jnp.square(acc - mean), axis=0, keepdims=True) * inv_m
        out = (acc - mean) * (g_ref[...] * jax.lax.rsqrt(var + BN_EPS)) + bt_ref[...]
        if res_ref is not None:
            out = out + res_ref[...].astype(jnp.float32)
        do_relu = mask_ref[...] > 0.5        # 1.0 -> ReLU, 0.0 -> identity
        out = jnp.where(do_relu, jnp.maximum(out, 0.0), out)
        o_ref[...] = out.astype(o_ref.dtype)


def _mm_stats_kernel(a_ref, b_ref, raw_ref, stats_ref, acc_ref):
    """Two-pass fallback, pass A: tiled matmul into an f32 scratch; at the last
    K step write the raw tile (bf16) and accumulate per-channel [sum; sum_sq]."""
    m_i = pl.program_id(0)
    k_i = pl.program_id(1)

    @pl.when((m_i == 0) & (k_i == 0))
    def _():
        stats_ref[...] = jnp.zeros_like(stats_ref)

    @pl.when(k_i == 0)
    def _():
        acc_ref[...] = jnp.zeros_like(acc_ref)

    acc_ref[...] += jnp.dot(a_ref[...], b_ref[...],
                            preferred_element_type=jnp.float32)

    @pl.when(k_i == pl.num_programs(1) - 1)
    def _():
        acc = acc_ref[...]
        raw_ref[...] = acc.astype(raw_ref.dtype)
        stats_ref[...] += jnp.concatenate(
            [jnp.sum(acc, axis=0, keepdims=True),
             jnp.sum(acc * acc, axis=0, keepdims=True)], axis=0)


def _bn_apply_kernel(raw_ref, stats_ref, g_ref, bt_ref, mask_ref, *rest,
                     has_res, inv_m):
    """Two-pass fallback, pass B: normalize with global batch stats, optional
    residual, channel-masked ReLU.  Output is aliased in place with raw."""
    if has_res:
        res_ref, o_ref = rest
    else:
        (o_ref,) = rest
        res_ref = None

    acc = raw_ref[...].astype(jnp.float32)
    st = stats_ref[...]
    mean = st[0:1, :] * inv_m
    var = jnp.maximum(st[1:2, :] * inv_m - mean * mean, 0.0)
    out = (acc - mean) * (g_ref[...] * jax.lax.rsqrt(var + BN_EPS)) + bt_ref[...]
    if res_ref is not None:
        out = out + res_ref[...].astype(jnp.float32)
    do_relu = mask_ref[...] > 0.5
    out = jnp.where(do_relu, jnp.maximum(out, 0.0), out)
    o_ref[...] = out.astype(o_ref.dtype)


def _max9_kernel(x_ref, o_ref):
    """x:(9, block_m, C) -> max over taps -> (block_m, C)   (3x3 max-pool)."""
    o_ref[...] = jnp.max(x_ref[...], axis=0)


def _avgpool_fc_kernel(x_ref, w_ref, b_ref, o_ref):
    """x:(HW, N, C) -> mean over HW -> (N, C); then (N,C)@(C,classes)+bias."""
    feat = jnp.mean(x_ref[...].astype(jnp.float32), axis=0)
    o_ref[...] = jnp.dot(feat, w_ref[...],
                         preferred_element_type=jnp.float32) + b_ref[...]


# ---------------------------------------------------------------------------
# VMEM-budget gates / block choices
# ---------------------------------------------------------------------------
def _direct_fits(m, w_sp, cin, cout, block_n, has_res, budget):
    mp = m + 2 * (w_sp + 1)
    by = 2 * mp * cin * 2                     # padded activation (whole)
    by += 2 * 9 * cin * block_n * 2           # weight block
    by += 2 * 2 * m * 128 * 4                 # coordinate arrays (lane padded)
    by += 2 * m * block_n * 2                 # output block
    if has_res:
        by += 2 * m * block_n * 2
    by += 2 * m * block_n * 4                 # f32 accumulator / temporaries
    return by <= budget


def _choose_block_k(m, k_pad, block_n, has_res, budget):
    """Full K if it fits; otherwise the largest 128-multiple divisor that does.
    Returns None if even the smallest block does not fit (-> two-pass)."""
    fixed = m * block_n * 4 + 2 * m * block_n * 2
    if has_res:
        fixed += 2 * m * block_n * 2
    cands = [k_pad] + [bk for bk in (4096, 2048, 1024, 512, 256, 128)
                       if bk < k_pad and k_pad % bk == 0]
    for bk in cands:
        if fixed + 2 * m * bk * 2 + 2 * bk * block_n * 2 <= budget:
            return bk
    return None


# ---------------------------------------------------------------------------
# Conv wrappers
# ---------------------------------------------------------------------------
def conv_bn_3x3_s1(x, w9, g2, b2, *, residual=None, relu=True):
    """Direct (no im2col) stride-1 pad-1 3x3 conv + BN(batch stats) [+res] [ReLU].

    x: NHWC bf16; w9: prepacked (9*Cin, Cout) bf16 (K ordered dy, dx, cin)."""
    n, h, w_sp, cin = x.shape
    cout = w9.shape[1]
    m = n * h * w_sp
    has_res = residual is not None
    block_n = _pick_block(cout, 256, 128)
    budget = VMEM_LIMIT // 2

    if not _direct_fits(m, w_sp, cin, cout, block_n, has_res, budget):
        # Rare fallback (huge activations): generic im2col path.
        k = w9.shape[0]
        k_pad = _round_up(k, LANE)
        wp = jnp.pad(w9, ((0, k_pad - k), (0, 0))) if k_pad != k else w9
        mask2 = jnp.full((1, cout), 1.0 if relu else 0.0, jnp.float32)
        return conv_bn_im2col(x, wp, k, g2, b2, mask2, kh=3, kw=3, stride=1,
                              padding=1, residual=residual)

    pad_rows = w_sp + 1
    a_pad = jnp.pad(x.reshape(m, cin), ((pad_rows, pad_rows), (0, 0)))
    mp = m + 2 * pad_rows
    xc, yc = _coord_arrays(n, h, w_sp)
    num_n = cout // block_n

    kern = functools.partial(_conv3x3_bn_kernel, has_res=has_res, relu=relu,
                             inv_m=1.0 / m, H=h, W=w_sp, cin=cin)
    in_specs = [
        pl.BlockSpec((mp, cin), lambda nb: (0, 0)),          # padded activation (resident)
        pl.BlockSpec((9 * cin, block_n), lambda nb: (0, nb)),
        pl.BlockSpec((m, 1), lambda nb: (0, 0)),
        pl.BlockSpec((m, 1), lambda nb: (0, 0)),
        pl.BlockSpec((1, block_n), lambda nb: (0, nb)),
        pl.BlockSpec((1, block_n), lambda nb: (0, nb)),
    ]
    args = [a_pad, w9, xc, yc, g2, b2]
    if has_res:
        in_specs.append(pl.BlockSpec((m, block_n), lambda nb: (0, nb)))
        args.append(residual.reshape(m, cout).astype(ACT_DTYPE))

    out = pl.pallas_call(
        kern,
        grid=(num_n,),
        in_specs=in_specs,
        out_specs=pl.BlockSpec((m, block_n), lambda nb: (0, nb)),
        out_shape=jax.ShapeDtypeStruct((m, cout), ACT_DTYPE),
        compiler_params=pltpu.CompilerParams(
            dimension_semantics=("parallel",),
            vmem_limit_bytes=VMEM_LIMIT),
    )(*args)
    return out.reshape(n, h, w_sp, cout)


def _im2col(x, kh, kw, stride, padding):
    """x: NHWC -> (N*Ho*Wo, kh*kw*C), K ordered (dy, dx, cin)."""
    n, h, w, c = x.shape
    xp = jnp.pad(x, ((0, 0), (padding, padding), (padding, padding), (0, 0)))
    ho = (h + 2 * padding - kh) // stride + 1
    wo = (w + 2 * padding - kw) // stride + 1
    cols = []
    for dy in range(kh):
        for dx in range(kw):
            cols.append(xp[:, dy:dy + stride * (ho - 1) + 1:stride,
                           dx:dx + stride * (wo - 1) + 1:stride, :])
    patches = jnp.concatenate(cols, axis=-1)            # (N, Ho, Wo, kh*kw*C)
    return patches.reshape(n * ho * wo, kh * kw * c), (n, ho, wo)


def conv_bn_im2col(x, wp, k_true, g2, b2, mask2, *, kh, kw, stride, padding,
                   residual=None):
    """im2col conv + BN(batch stats) [+res] [channel-masked ReLU].
    Used for the 7x7 stem and the stride-2 conv1+downsample fusions.

    wp: prepacked (K_pad, Cout) bf16 (K ordered dy, dx, cin; zero padded)."""
    cout = wp.shape[1]
    k_pad = wp.shape[0]
    a, (n, ho, wo) = _im2col(x, kh, kw, stride, padding)
    if k_pad != k_true:
        a = jnp.pad(a, ((0, 0), (0, k_pad - k_true)))
    m = n * ho * wo
    has_res = residual is not None
    res2 = residual.reshape(m, cout).astype(ACT_DTYPE) if has_res else None

    block_n = _pick_block(cout, 256, 128)
    budget = VMEM_LIMIT // 2
    block_k = _choose_block_k(m, k_pad, block_n, has_res, budget)

    if block_k is not None:
        out = _mm_bn_fused(a, wp, g2, b2, mask2, res2, m, cout, block_n, block_k)
    else:
        out = _mm_bn_two_pass(a, wp, g2, b2, mask2, res2, m, cout)
    return out.reshape(n, ho, wo, cout)


def _mm_bn_fused(a, b, g2, b2, m2, res2, m, cout, block_n, block_k):
    k_pad = a.shape[1]
    num_k = k_pad // block_k
    num_n = cout // block_n
    has_res = res2 is not None

    kern = functools.partial(_mm_bn_fused_kernel, has_res=has_res, inv_m=1.0 / m)
    in_specs = [
        pl.BlockSpec((m, block_k), lambda nb, kb: (0, kb)),
        pl.BlockSpec((block_k, block_n), lambda nb, kb: (kb, nb)),
        pl.BlockSpec((1, block_n), lambda nb, kb: (0, nb)),
        pl.BlockSpec((1, block_n), lambda nb, kb: (0, nb)),
        pl.BlockSpec((1, block_n), lambda nb, kb: (0, nb)),
    ]
    args = [a, b, g2, b2, m2]
    if has_res:
        in_specs.append(pl.BlockSpec((m, block_n), lambda nb, kb: (0, nb)))
        args.append(res2)
    return pl.pallas_call(
        kern,
        grid=(num_n, num_k),
        in_specs=in_specs,
        out_specs=pl.BlockSpec((m, block_n), lambda nb, kb: (0, nb)),
        out_shape=jax.ShapeDtypeStruct((m, cout), ACT_DTYPE),
        scratch_shapes=[pltpu.VMEM((m, block_n), jnp.float32)],
        compiler_params=pltpu.CompilerParams(
            dimension_semantics=("parallel", "arbitrary"),
            vmem_limit_bytes=VMEM_LIMIT),
    )(*args)


def _mm_bn_two_pass(a, b, g2, b2, m2, res2, m, cout):
    """Fallback for activations too large for the single-pass fused kernel."""
    k_pad = a.shape[1]
    block_k = _pick_block(k_pad, 512, LANE)
    block_m = _pick_block(m, 512, 16)   # NOTE: may fall back to m (VMEM risk) on awkward sizes
    num_m = m // block_m
    num_k = k_pad // block_k
    has_res = res2 is not None

    raw, stats = pl.pallas_call(
        _mm_stats_kernel,
        grid=(num_m, num_k),
        in_specs=[
            pl.BlockSpec((block_m, block_k), lambda i, k: (i, k)),
            pl.BlockSpec((block_k, cout), lambda i, k: (k, 0)),
        ],
        out_specs=[
            pl.BlockSpec((block_m, cout), lambda i, k: (i, 0)),
            pl.BlockSpec((2, cout), lambda i, k: (0, 0)),
        ],
        out_shape=[
            jax.ShapeDtypeStruct((m, cout), ACT_DTYPE),      # raw in bf16
            jax.ShapeDtypeStruct((2, cout), jnp.float32),
        ],
        scratch_shapes=[pltpu.VMEM((block_m, cout), jnp.float32)],
        compiler_params=pltpu.CompilerParams(
            dimension_semantics=("arbitrary", "arbitrary"),
            vmem_limit_bytes=VMEM_LIMIT),
    )(a, b)

    kern = functools.partial(_bn_apply_kernel, has_res=has_res, inv_m=1.0 / m)
    in_specs = [
        pl.BlockSpec((block_m, cout), lambda i: (i, 0)),
        pl.BlockSpec((2, cout), lambda i: (0, 0)),
        pl.BlockSpec((1, cout), lambda i: (0, 0)),
        pl.BlockSpec((1, cout), lambda i: (0, 0)),
        pl.BlockSpec((1, cout), lambda i: (0, 0)),
    ]
    args = [raw, stats, g2, b2, m2]
    if has_res:
        in_specs.append(pl.BlockSpec((block_m, cout), lambda i: (i, 0)))
        args.append(res2)
    return pl.pallas_call(
        kern,
        grid=(num_m,),
        in_specs=in_specs,
        out_specs=pl.BlockSpec((block_m, cout), lambda i: (i, 0)),
        out_shape=jax.ShapeDtypeStruct((m, cout), ACT_DTYPE),
        input_output_aliases={0: 0},          # normalize raw in place
        compiler_params=pltpu.CompilerParams(
            dimension_semantics=("parallel",),
            vmem_limit_bytes=VMEM_LIMIT),
    )(*args)


def maxpool3x3_s2_p1(x):
    """PyTorch nn.MaxPool2d(kernel_size=3, stride=2, padding=1) on NHWC."""
    n, h, w, c = x.shape
    k, stride, pad = 3, 2, 1
    xp = jnp.pad(x, ((0, 0), (pad, pad), (pad, pad), (0, 0)),
                 constant_values=-jnp.inf)
    ho = (h + 2 * pad - k) // stride + 1
    wo = (w + 2 * pad - k) // stride + 1
    taps = []
    for dy in range(k):
        for dx in range(k):
            taps.append(xp[:, dy:dy + stride * (ho - 1) + 1:stride,
                           dx:dx + stride * (wo - 1) + 1:stride, :]
                        .reshape(n * ho * wo, c))
    stacked = jnp.stack(taps, axis=0)                    # (9, M, C)
    m = n * ho * wo
    block_m = _pick_block(m, 512, 8)
    num_m = m // block_m
    out = pl.pallas_call(
        _max9_kernel,
        grid=(num_m,),
        in_specs=[pl.BlockSpec((9, block_m, c), lambda i: (0, i, 0))],
        out_specs=pl.BlockSpec((block_m, c), lambda i: (i, 0)),
        out_shape=jax.ShapeDtypeStruct((m, c), x.dtype),
        compiler_params=pltpu.CompilerParams(
            dimension_semantics=("parallel",),
            vmem_limit_bytes=VMEM_LIMIT),
    )(stacked)
    return out.reshape(n, ho, wo, c)


def avgpool_fc(x, fc_w, fc_b):
    """AdaptiveAvgPool2d(1) + flatten + Linear, fused in one Pallas kernel."""
    n, h, w, c = x.shape
    num_classes = fc_w.shape[1]
    x_t = jnp.transpose(x.reshape(n, h * w, c), (1, 0, 2))  # (HW, N, C)
    return pl.pallas_call(
        _avgpool_fc_kernel,
        out_shape=jax.ShapeDtypeStruct((n, num_classes), jnp.float32),
        in_specs=[_VMEM, _VMEM, _VMEM],
        out_specs=_VMEM,
        compiler_params=pltpu.CompilerParams(vmem_limit_bytes=VMEM_LIMIT),
    )(x_t, fc_w, fc_b)


# ---------------------------------------------------------------------------
# ResNet-18 (BasicBlock) forward
# ---------------------------------------------------------------------------
def basic_block(x, bp):
    planes = bp["planes"]
    if bp["has_ds"]:
        # conv1 (stride-2) fused with the 1x1 downsample (padded to a 3x3
        # center tap, channels concatenated) -> one im2col matmul; per-channel
        # ReLU mask keeps the two branches' semantics.
        y = conv_bn_im2col(x, bp["c1ds_w"], bp["c1ds_k"], bp["c1ds_g"],
                           bp["c1ds_b"], bp["c1ds_mask"],
                           kh=3, kw=3, stride=bp["stride"], padding=1)
        out = y[..., :planes]
        res = y[..., planes:]
    else:
        out = conv_bn_3x3_s1(x, bp["c1_w9"], bp["c1_g"], bp["c1_b"], relu=True)
        res = x
    out = conv_bn_3x3_s1(out, bp["c2_w9"], bp["c2_g"], bp["c2_b"],
                         residual=res, relu=True)
    return out


def resnet18_forward(packed, x_nchw):
    x = jnp.transpose(x_nchw, (0, 2, 3, 1)).astype(ACT_DTYPE)  # NCHW -> NHWC
    st = packed["stem"]
    x = conv_bn_im2col(x, st["w"], st["k"], st["g"], st["b"], st["mask"],
                       kh=7, kw=7, stride=2, padding=3)
    x = maxpool3x3_s2_p1(x)
    for layer in packed["layers"]:
        for bp in layer:
            x = basic_block(x, bp)
    return avgpool_fc(x, packed["fc_w"], packed["fc_b"])


# ---------------------------------------------------------------------------
# One-time parameter packing (hoists all weight transposes / pads / concats)
# ---------------------------------------------------------------------------
def pack_params(params):
    def pack_w_padded(w):
        cout, cin, kh, kw = w.shape
        k = kh * kw * cin
        b = jnp.transpose(w, (2, 3, 1, 0)).reshape(k, cout)
        k_pad = _round_up(k, LANE)
        if k_pad != k:
            b = jnp.pad(b, ((0, k_pad - k), (0, 0)))
        return b.astype(ACT_DTYPE), k

    def pack_w9(w):
        cout, cin, kh, kw = w.shape
        return (jnp.transpose(w, (2, 3, 1, 0))
                .reshape(kh * kw * cin, cout).astype(ACT_DTYPE))

    def row(v):
        return v.reshape(1, -1).astype(jnp.float32)

    packed = {}
    wp, k = pack_w_padded(params["conv1_w"])
    packed["stem"] = dict(w=wp, k=k, g=row(params["bn1_g"]),
                          b=row(params["bn1_b"]),
                          mask=jnp.ones((1, params["conv1_w"].shape[0]),
                                        jnp.float32))

    layers_p = []
    for layer in params["layers"]:
        lp = []
        for blk in layer:
            planes = blk["conv1_w"].shape[0]
            bp = {"stride": blk["stride"], "planes": planes,
                  "has_ds": "ds_w" in blk}
            if bp["has_ds"]:
                ds_w3 = jnp.pad(blk["ds_w"], ((0, 0), (0, 0), (1, 1), (1, 1)))
                w_cat = jnp.concatenate([blk["conv1_w"], ds_w3], axis=0)
                wp, k = pack_w_padded(w_cat)
                bp["c1ds_w"] = wp
                bp["c1ds_k"] = k
                bp["c1ds_g"] = row(jnp.concatenate([blk["bn1_g"], blk["ds_bn_g"]]))
                bp["c1ds_b"] = row(jnp.concatenate([blk["bn1_b"], blk["ds_bn_b"]]))
                bp["c1ds_mask"] = jnp.concatenate(
                    [jnp.ones((1, planes), jnp.float32),
                     jnp.zeros((1, planes), jnp.float32)], axis=1)
            else:
                bp["c1_w9"] = pack_w9(blk["conv1_w"])
                bp["c1_g"] = row(blk["bn1_g"])
                bp["c1_b"] = row(blk["bn1_b"])
            bp["c2_w9"] = pack_w9(blk["conv2_w"])
            bp["c2_g"] = row(blk["bn2_g"])
            bp["c2_b"] = row(blk["bn2_b"])
            lp.append(bp)
        layers_p.append(lp)
    packed["layers"] = layers_p

    packed["fc_w"] = params["fc_w"].T.astype(jnp.float32)
    packed["fc_b"] = params["fc_b"].reshape(1, -1).astype(jnp.float32)
    return packed


# ---------------------------------------------------------------------------
# Deterministic parameter initialization (shapes per ResNetConfig(variant=18))
# ---------------------------------------------------------------------------
def init_params(key, num_classes=10):
    key_holder = [key]

    def nxt():
        key_holder[0], sub = jax.random.split(key_holder[0])
        return sub

    def conv_w(cout, cin, k):
        fan_in = cin * k * k
        return jax.random.normal(nxt(), (cout, cin, k, k), jnp.float32) / jnp.sqrt(fan_in)

    def bn(c):
        g = 1.0 + 0.1 * jax.random.normal(nxt(), (c,), jnp.float32)
        b = 0.1 * jax.random.normal(nxt(), (c,), jnp.float32)
        return g, b

    params = {}
    params["conv1_w"] = conv_w(64, 3, 7)
    params["bn1_g"], params["bn1_b"] = bn(64)

    layers = []
    in_planes = 64
    for planes, nblocks, first_stride in zip((64, 128, 256, 512),
                                             (2, 2, 2, 2),
                                             (1, 2, 2, 2)):
        layer = []
        for bi in range(nblocks):
            stride = first_stride if bi == 0 else 1
            blk = {"stride": stride}
            blk["conv1_w"] = conv_w(planes, in_planes, 3)
            blk["bn1_g"], blk["bn1_b"] = bn(planes)
            blk["conv2_w"] = conv_w(planes, planes, 3)
            blk["bn2_g"], blk["bn2_b"] = bn(planes)
            if stride != 1 or in_planes != planes:  # BasicBlock.expansion == 1
                blk["ds_w"] = conv_w(planes, in_planes, 1)
                blk["ds_bn_g"], blk["ds_bn_b"] = bn(planes)
            layer.append(blk)
            in_planes = planes
        layers.append(layer)
    params["layers"] = layers

    params["fc_w"] = jax.random.normal(nxt(), (num_classes, 512), jnp.float32) / jnp.sqrt(512.0)
    params["fc_b"] = 0.01 * jax.random.normal(nxt(), (num_classes,), jnp.float32)
    return params


if __name__ == "__main__":
    key = jax.random.PRNGKey(0)
    pkey, xkey = jax.random.split(key)
    num_classes = 10
    params = init_params(pkey, num_classes=num_classes)
    packed = pack_params(params)   # one-time weight packing (item 9 of review)

    # Small input consistent with the module: NCHW, 3 input channels.
    x = jax.random.normal(xkey, (2, 3, 32, 32), jnp.float32)

    logits = resnet18_forward(packed, x)
    logits = jax.block_until_ready(logits)
    assert logits.shape == (2, num_classes)
    assert bool(jnp.all(jnp.isfinite(logits)))
    print("KERNEL_OK")
</pallas_src>

<mosaic_0001>
module attributes {stable_mosaic.version = 11 : i64} {
  func.func @_mm_bn_fused_kernel(%arg0: i32, %arg1: i32, %arg2: memref<512x256xbf16, #tpu.memory_space<vmem>>, %arg3: memref<256x64xbf16, #tpu.memory_space<vmem>>, %arg4: memref<1x64xf32, #tpu.memory_space<vmem>>, %arg5: memref<1x64xf32, #tpu.memory_space<vmem>>, %arg6: memref<1x64xf32, #tpu.memory_space<vmem>>, %arg7: memref<512x64xbf16, #tpu.memory_space<vmem>>, %arg8: memref<512x64xf32, #tpu.memory_space<vmem>>) attributes {dimension_semantics = [#tpu.dimension_semantics<parallel>, #tpu.dimension_semantics<arbitrary>], iteration_bounds = array<i64: 1, 1>, scalar_prefetch = 0 : i64, scratch_operands = 1 : i64, tpu.core_type = #tpu.core_type<tc>, window_params = [{transform_indices = @transform_0, window_bounds = array<i64: 512, 256>}, {transform_indices = @transform_1, window_bounds = array<i64: 256, 64>}, {transform_indices = @transform_2, window_bounds = array<i64: 1, 64>}, {transform_indices = @transform_3, window_bounds = array<i64: 1, 64>}, {transform_indices = @transform_4, window_bounds = array<i64: 1, 64>}, {transform_indices = @transform_5, window_bounds = array<i64: 512, 64>}]} {
    %c0_i32 = arith.constant 0 : i32
    %0 = arith.cmpi eq, %arg1, %c0_i32 : i32
    %1 = arith.extui %0 : i1 to i32
    %c0_i32_0 = arith.constant 0 : i32
    %2 = arith.cmpi ne, %1, %c0_i32_0 : i32
    scf.if %2 {
      %cst_10 = arith.constant 0.000000e+00 : f32
      %12 = vector.broadcast %cst_10 : f32 to vector<512x64xf32>
      %c0_11 = arith.constant 0 : index
      %c0_12 = arith.constant 0 : index
      %13 = vector.load %arg8[%c0_11, %c0_12] : memref<512x64xf32, #tpu.memory_space<vmem>>, vector<512x64xf32>
      tpu.vector_store %arg8[%c0_11, %c0_12], %12 {strides = array<i32>} : memref<512x64xf32, #tpu.memory_space<vmem>>, vector<512x64xf32>,
    } else {
    }
    %c0 = arith.constant 0 : index
    %c0_1 = arith.constant 0 : index
    %3 = vector.load %arg8[%c0, %c0_1] : memref<512x64xf32, #tpu.memory_space<vmem>>, vector<512x64xf32>
    %c0_2 = arith.constant 0 : index
    %c0_3 = arith.constant 0 : index
    %4 = vector.load %arg2[%c0_2, %c0_3] : memref<512x256xbf16, #tpu.memory_space<vmem>>, vector<512x256xbf16>
    %c0_4 = arith.constant 0 : index
    %c0_5 = arith.constant 0 : index
    %5 = vector.load %arg3[%c0_4, %c0_5] : memref<256x64xbf16, #tpu.memory_space<vmem>>, vector<256x64xbf16>
    %cst = arith.constant dense<0.000000e+00> : vector<512x64xf32>
    %6 = tpu.matmul %4, %5, %cst {dimension_numbers = #tpu.dot_dimension_numbers<[1], [0], [0], [1], [0, 0, 1, 1], [], []>} : vector<512x256xbf16>, vector<256x64xbf16>, vector<512x64xf32> -> vector<512x64xf32>
    %7 = arith.addf %3, %6 : vector<512x64xf32>
    %c0_6 = arith.constant 0 : index
    %c0_7 = arith.constant 0 : index
    %8 = vector.load %arg8[%c0_6, %c0_7] : memref<512x64xf32, #tpu.memory_space<vmem>>, vector<512x64xf32>
    tpu.vector_store %arg8[%c0_6, %c0_7], %7 {strides = array<i32>} : memref<512x64xf32, #tpu.memory_space<vmem>>, vector<512x64xf32>,
    %c0_i32_8 = arith.constant 0 : i32
    %9 = arith.cmpi eq, %arg1, %c0_i32_8 : i32
    %10 = arith.extui %9 : i1 to i32
    %c0_i32_9 = arith.constant 0 : i32
    %11 = arith.cmpi ne, %10, %c0_i32_9 : i32
    scf.if %11 {
      %c0_10 = arith.constant 0 : index
      %c0_11 = arith.constant 0 : index
      %12 = vector.load %arg8[%c0_10, %c0_11] : memref<512x64xf32, #tpu.memory_space<vmem>>, vector<512x64xf32>
      %cst_12 = arith.constant dense<0.000000e+00> : vector<64xf32>
      %13 = vector.multi_reduction <add>, %12, %cst_12 [0] : vector<512x64xf32> to vector<64xf32>
      %14 = vector.shape_cast %13 : vector<64xf32> to vector<1x64xf32>
      %cst_13 = arith.constant 0.001953125 : f32
      %15 = vector.broadcast %cst_13 : f32 to vector<1x64xf32>
      %16 = arith.mulf %14, %15 : vector<1x64xf32>
      %17 = vector.broadcast %16 : vector<1x64xf32> to vector<512x64xf32>
      %18 = arith.subf %12, %17 : vector<512x64xf32>
      %19 = arith.mulf %18, %18 : vector<512x64xf32>
      %cst_14 = arith.constant dense<0.000000e+00> : vector<64xf32>
      %20 = vector.multi_reduction <add>, %19, %cst_14 [0] : vector<512x64xf32> to vector<64xf32>
      %21 = vector.shape_cast %20 : vector<64xf32> to vector<1x64xf32>
      %cst_15 = arith.constant 0.001953125 : f32
      %22 = vector.broadcast %cst_15 : f32 to vector<1x64xf32>
      %23 = arith.mulf %21, %22 : vector<1x64xf32>
      %24 = vector.broadcast %16 : vector<1x64xf32> to vector<512x64xf32>
      %25 = arith.subf %12, %24 : vector<512x64xf32>
      %c0_16 = arith.constant 0 : index
      %c0_17 = arith.constant 0 : index
      %26 = vector.load %arg4[%c0_16, %c0_17] : memref<1x64xf32, #tpu.memory_space<vmem>>, vector<1x64xf32>
      %cst_18 = arith.constant 9.99999974E-6 : f32
      %27 = vector.broadcast %cst_18 : f32 to vector<1x64xf32>
      %28 = arith.addf %23, %27 : vector<1x64xf32>
      %29 = math.rsqrt %28 : vector<1x64xf32>
      %30 = arith.mulf %26, %29 : vector<1x64xf32>
      %31 = vector.broadcast %30 : vector<1x64xf32> to vector<512x64xf32>
      %32 = arith.mulf %25, %31 : vector<512x64xf32>
      %c0_19 = arith.constant 0 : index
      %c0_20 = arith.constant 0 : index
      %33 = vector.load %arg5[%c0_19, %c0_20] : memref<1x64xf32, #tpu.memory_space<vmem>>, vector<1x64xf32>
      %34 = vector.broadcast %33 : vector<1x64xf32> to vector<512x64xf32>
      %35 = arith.addf %32, %34 : vector<512x64xf32>
      %c0_21 = arith.constant 0 : index
      %c0_22 = arith.constant 0 : index
      %36 = vector.load %arg6[%c0_21, %c0_22] : memref<1x64xf32, #tpu.memory_space<vmem>>, vector<1x64xf32>
      %cst_23 = arith.constant 5.000000e-01 : f32
      %37 = vector.broadcast %cst_23 : f32 to vector<1x64xf32>
      %38 = arith.cmpf ogt, %36, %37 : vector<1x64xf32>
      %cst_24 = arith.constant 0.000000e+00 : f32
      %39 = vector.broadcast %cst_24 : f32 to vector<512x64xf32>
      %40 = arith.maximumf %35, %39 : vector<512x64xf32>
      %41 = vector.shape_cast %38 : vector<1x64xi1> to vector<1x64xi1>
      %42 = vector.broadcast %41 : vector<1x64xi1> to vector<512x64xi1>
      %43 = arith.select %42, %40, %35 : vector<512x64xi1>, vector<512x64xf32>
      %44 = arith.truncf %43 : vector<512x64xf32> to vector<512x64xbf16>
      %c0_25 = arith.constant 0 : index
      %c0_26 = arith.constant 0 : index
      %45 = vector.load %arg7[%c0_25, %c0_26] : memref<512x64xbf16, #tpu.memory_space<vmem>>, vector<512x64xbf16>
      tpu.vector_store %arg7[%c0_25, %c0_26], %44 {strides = array<i32>} : memref<512x64xbf16, #tpu.memory_space<vmem>>, vector<512x64xbf16>,
    } else {
    }
    return
  }
  func.func @transform_0(%arg0: i32, %arg1: i32) -> (i32, i32) {
    %c0_i32 = arith.constant 0 : i32
    %c0_i32_0 = arith.constant 0 : i32
    return %c0_i32, %arg1 : i32, i32
  }
  func.func @transform_1(%arg0: i32, %arg1: i32) -> (i32, i32) {
    %c0_i32 = arith.constant 0 : i32
    return %arg1, %arg0 : i32, i32
  }
  func.func @transform_2(%arg0: i32, %arg1: i32) -> (i32, i32) {
    %c0_i32 = arith.constant 0 : i32
    %c0_i32_0 = arith.constant 0 : i32
    return %c0_i32, %arg0 : i32, i32
  }
  func.func @transform_3(%arg0: i32, %arg1: i32) -> (i32, i32) {
    %c0_i32 = arith.constant 0 : i32
    %c0_i32_0 = arith.constant 0 : i32
    return %c0_i32, %arg0 : i32, i32
  }
  func.func @transform_4(%arg0: i32, %arg1: i32) -> (i32, i32) {
    %c0_i32 = arith.constant 0 : i32
    %c0_i32_0 = arith.constant 0 : i32
    return %c0_i32, %arg0 : i32, i32
  }
  func.func @transform_5(%arg0: i32, %arg1: i32) -> (i32, i32) {
    %c0_i32 = arith.constant 0 : i32
    %c0_i32_0 = arith.constant 0 : i32
    return %c0_i32, %arg0 : i32, i32
  }
}

</mosaic_0001>

<llo_original>
// kernel: tpu_custom_call.1
$region0: #{tpu_custom_call.1}
  #allocation0 [shape = 'u32[]', space=smem, size = 0x4, offset = 0x4, fixed_abs, tag = 'smem constant byte address 0x4 - core index']
  #allocation1 [shape = 'u32[144,128]{1,0:T(1,128)}', space=vmem, size = 0x12000, scoped, tag = 'internal scratch']
  #allocation2 [shape = 'f32[512,64]{1,0:T(8,128)}', space=vmem, size = 0x40000, scoped, tag = 'scratch operand']
  %s0 = inlined_call_operand.hbm [shape: bf16[512,256], index: 0, kind: input, shape index: {}]
  %s1 = inlined_call_operand.vmem [shape: bf16[256,64], index: 1, kind: input, shape index: {}]
  %s2 = inlined_call_operand.vmem [shape: f32[1,64], index: 2, kind: input, shape index: {}]
  %s3 = inlined_call_operand.vmem [shape: f32[1,64], index: 3, kind: input, shape index: {}]
  %s4 = inlined_call_operand.vmem [shape: f32[1,64], index: 4, kind: input, shape index: {}]
  %s5 = inlined_call_operand.vmem [shape: bf16[512,64], index: 5, kind: output, shape index: {}]
  %s6 = sld [smem:[#allocation0]]
  $region42: #{tpu_custom_call.1} parent=0
    _
  %s8 = ssub.s32 1, %s6
  %s9 = scalar_select 0, %s8, %s6
  $region1: #{tpu_custom_call.1} parent=0
    #allocation3 [shape = 'u8[262144]{0}', space=vmem, size = 0x40000, scoped, tag = 'input window, operand 0, single buffered']
    #allocation4 [shape = 's32[1]{0}', space=sflag, size = 0x4, scoped, tag = 'scoped memory for tpu_custom_call.1']
    %10 = vsyncpa [#allocation4], 0
    // Predicated region
    $region2: #{tpu_custom_call.1} parent=1 // pred_check
      _
    $region3: #{tpu_custom_call.1} parent=1 // pred_check_branch
      %12 = sbr.rel (0) target = $region5
    $region4: #{tpu_custom_call.1} parent=1 // pred_region
      %s14 = ssub.s32 8192, 8192
      %15 = vsyncadd [#allocation4], %s14
      %s16 = sshll.u32 [#allocation3], 4
      %s17 = int_to_ptr.vmem [resolvable:$true] %s16
      %22 = dma.hbm_to_vmem [thread:$0]  %s0, 8192, %s17, [#allocation4], 128, 128, 8
    $region5: #{tpu_custom_call.1} parent=1 // pred_fallthru
      _
    // Predicated region
    $region6: #{tpu_custom_call.1} parent=1 // pred_check
      _
    $region7: #{tpu_custom_call.1} parent=1 // pred_check_branch
      %24 = sbr.rel (0) target = $region9
    $region8: #{tpu_custom_call.1} parent=1 // pred_region
      _
    $region9: #{tpu_custom_call.1} parent=1 // pred_fallthru
      _
    // Predicated region
    $region10: #{tpu_custom_call.1} parent=1 // pred_check
      _
    $region11: #{tpu_custom_call.1} parent=1 // pred_check_branch
      %26 = sbr.rel (0) target = $region13
    $region12: #{tpu_custom_call.1} parent=1 // pred_region
      _
    $region13: #{tpu_custom_call.1} parent=1 // pred_fallthru
      _
    // Predicated region
    $region14: #{tpu_custom_call.1} parent=1 // pred_check
      _
    $region15: #{tpu_custom_call.1} parent=1 // pred_check_branch
      %28 = sbr.rel (0) target = $region17
    $region16: #{tpu_custom_call.1} parent=1 // pred_region
      _
    $region17: #{tpu_custom_call.1} parent=1 // pred_fallthru
      _
    // Predicated region
    $region18: #{tpu_custom_call.1} parent=1 // pred_check
      _
    $region19: #{tpu_custom_call.1} parent=1 // pred_check_branch
      %30 = sbr.rel (0) target = $region21
    $region20: #{tpu_custom_call.1} parent=1 // pred_region
      _
    $region21: #{tpu_custom_call.1} parent=1 // pred_fallthru
      _
    // Predicated region
    $region22: #{tpu_custom_call.1} parent=1 // pred_check
      _
    $region23: #{tpu_custom_call.1} parent=1 // pred_check_branch
      %32 = sbr.rel (0) target = $region25
    $region24: #{tpu_custom_call.1} parent=1 // pred_region
      %33 = dma.done [#allocation4], 8192
    $region25: #{tpu_custom_call.1} parent=1 // pred_fallthru
      _
    %p35 = scmp.eq.s32.totalorder 0, 0
    // Predicated region
    $region26: #{tpu_custom_call.1} parent=1 // pred_check
      %p36 = pneg %p35
    $region27: #{tpu_custom_call.1} parent=1 // pred_check_branch
      %38 = sbr.rel (%p36) target = $region29
    $region28: #{tpu_custom_call.1} parent=1 // pred_region
      %vm39 = vcmask 523264
      %40 = vst.msk [vmem:[#allocation2] sm:$0xff] %vm39, 0.0
      %41 = vst.msk [vmem:[#allocation2 + $0x8] sm:$0xff] %vm39, 0.0
      %42 = vst.msk [vmem:[#allocation2 + $0x10] sm:$0xff] %vm39, 0.0
      %43 = vst.msk [vmem:[#allocation2 + $0x18] sm:$0xff] %vm39, 0.0
      %44 = vst.msk [vmem:[#allocation2 + $0x20] sm:$0xff] %vm39, 0.0
      %45 = vst.msk [vmem:[#allocation2 + $0x28] sm:$0xff] %vm39, 0.0
      %46 = vst.msk [vmem:[#allocation2 + $0x30] sm:$0xff] %vm39, 0.0
      %47 = vst.msk [vmem:[#allocation2 + $0x38] sm:$0xff] %vm39, 0.0
      %48 = vst.msk [vmem:[#allocation2 + $0x40] sm:$0xff] %vm39, 0.0
      %49 = vst.msk [vmem:[#allocation2 + $0x48] sm:$0xff] %vm39, 0.0
      %50 = vst.msk [vmem:[#allocation2 + $0x50] sm:$0xff] %vm39, 0.0
      %51 = vst.msk [vmem:[#allocation2 + $0x58] sm:$0xff] %vm39, 0.0
      %52 = vst.msk [vmem:[#allocation2 + $0x60] sm:$0xff] %vm39, 0.0
      %53 = vst.msk [vmem:[#allocation2 + $0x68] sm:$0xff] %vm39, 0.0
      %54 = vst.msk [vmem:[#allocation2 + $0x70] sm:$0xff] %vm39, 0.0
      %55 = vst.msk [vmem:[#allocation2 + $0x78] sm:$0xff] %vm39, 0.0
      %56 = vst.msk [vmem:[#allocation2 + $0x80] sm:$0xff] %vm39, 0.0
      %57 = vst.msk [vmem:[#allocation2 + $0x88] sm:$0xff] %vm39, 0.0
      %58 = vst.msk [vmem:[#allocation2 + $0x90] sm:$0xff] %vm39, 0.0
      %59 = vst.msk [vmem:[#allocation2 + $0x98] sm:$0xff] %vm39, 0.0
      %60 = vst.msk [vmem:[#allocation2 + $0xa0] sm:$0xff] %vm39, 0.0
      %61 = vst.msk [vmem:[#allocation2 + $0xa8] sm:$0xff] %vm39, 0.0
      %62 = vst.msk [vmem:[#allocation2 + $0xb0] sm:$0xff] %vm39, 0.0
      %63 = vst.msk [vmem:[#allocation2 + $0xb8] sm:$0xff] %vm39, 0.0
      %64 = vst.msk [vmem:[#allocation2 + $0xc0] sm:$0xff] %vm39, 0.0
      %65 = vst.msk [vmem:[#allocation2 + $0xc8] sm:$0xff] %vm39, 0.0
      %66 = vst.msk [vmem:[#allocation2 + $0xd0] sm:$0xff] %vm39, 0.0
      %67 = vst.msk [vmem:[#allocation2 + $0xd8] sm:$0xff] %vm39, 0.0
      %68 = vst.msk [vmem:[#allocation2 + $0xe0] sm:$0xff] %vm39, 0.0
      %69 = vst.msk [vmem:[#allocation2 + $0xe8] sm:$0xff] %vm39, 0.0
      %70 = vst.msk [vmem:[#allocation2 + $0xf0] sm:$0xff] %vm39, 0.0
      %71 = vst.msk [vmem:[#allocation2 + $0xf8] sm:$0xff] %vm39, 0.0
      %72 = vst.msk [vmem:[#allocation2 + $0x100] sm:$0xff] %vm39, 0.0
      %73 = vst.msk [vmem:[#allocation2 + $0x108] sm:$0xff] %vm39, 0.0
      %74 = vst.msk [vmem:[#allocation2 + $0x110] sm:$0xff] %vm39, 0.0
      %75 = vst.msk [vmem:[#allocation2 + $0x118] sm:$0xff] %vm39, 0.0
      %76 = vst.msk [vmem:[#allocation2 + $0x120] sm:$0xff] %vm39, 0.0
      %77 = vst.msk [vmem:[#allocation2 + $0x128] sm:$0xff] %vm39, 0.0
      %78 = vst.msk [vmem:[#allocation2 + $0x130] sm:$0xff] %vm39, 0.0
      %79 = vst.msk [vmem:[#allocation2 + $0x138] sm:$0xff] %vm39, 0.0
      %80 = vst.msk [vmem:[#allocation2 + $0x140] sm:$0xff] %vm39, 0.0
      %81 = vst.msk [vmem:[#allocation2 + $0x148] sm:$0xff] %vm39, 0.0
      %82 = vst.msk [vmem:[#allocation2 + $0x150] sm:$0xff] %vm39, 0.0
      %83 = vst.msk [vmem:[#allocation2 + $0x158] sm:$0xff] %vm39, 0.0
      %84 = vst.msk [vmem:[#allocation2 + $0x160] sm:$0xff] %vm39, 0.0
      %85 = vst.msk [vmem:[#allocation2 + $0x168] sm:$0xff] %vm39, 0.0
      %86 = vst.msk [vmem:[#allocation2 + $0x170] sm:$0xff] %vm39, 0.0
      %87 = vst.msk [vmem:[#allocation2 + $0x178] sm:$0xff] %vm39, 0.0
      %88 = vst.msk [vmem:[#allocation2 + $0x180] sm:$0xff] %vm39, 0.0
      %89 = vst.msk [vmem:[#allocation2 + $0x188] sm:$0xff] %vm39, 0.0
      %90 = vst.msk [vmem:[#allocation2 + $0x190] sm:$0xff] %vm39, 0.0
      %91 = vst.msk [vmem:[#allocation2 + $0x198] sm:$0xff] %vm39, 0.0
      %92 = vst.msk [vmem:[#allocation2 + $0x1a0] sm:$0xff] %vm39, 0.0
      %93 = vst.msk [vmem:[#allocation2 + $0x1a8] sm:$0xff] %vm39, 0.0
      %94 = vst.msk [vmem:[#allocation2 + $0x1b0] sm:$0xff] %vm39, 0.0
      %95 = vst.msk [vmem:[#allocation2 + $0x1b8] sm:$0xff] %vm39, 0.0
      %96 = vst.msk [vmem:[#allocation2 + $0x1c0] sm:$0xff] %vm39, 0.0
      %97 = vst.msk [vmem:[#allocation2 + $0x1c8] sm:$0xff] %vm39, 0.0
      %98 = vst.msk [vmem:[#allocation2 + $0x1d0] sm:$0xff] %vm39, 0.0
      %99 = vst.msk [vmem:[#allocation2 + $0x1d8] sm:$0xff] %vm39, 0.0
      %100 = vst.msk [vmem:[#allocation2 + $0x1e0] sm:$0xff] %vm39, 0.0
      %101 = vst.msk [vmem:[#allocation2 + $0x1e8] sm:$0xff] %vm39, 0.0
      %102 = vst.msk [vmem:[#allocation2 + $0x1f0] sm:$0xff] %vm39, 0.0
      %103 = vst.msk [vmem:[#allocation2 + $0x1f8] sm:$0xff] %vm39, 0.0
    $region29: #{tpu_custom_call.1} parent=1 // pred_fallthru
      _
    %v104 = vld [vmem:[#allocation2] sm:$0xff]
    %v105 = vld [vmem:[#allocation2 + $0x8] sm:$0xff]
    %v106 = vld [vmem:[#allocation2 + $0x10] sm:$0xff]
    %v107 = vld [vmem:[#allocation2 + $0x18] sm:$0xff]
    %v108 = vld [vmem:[#allocation2 + $0x20] sm:$0xff]
    %v109 = vld [vmem:[#allocation2 + $0x28] sm:$0xff]
    %v110 = vld [vmem:[#allocation2 + $0x30] sm:$0xff]
    %v111 = vld [vmem:[#allocation2 + $0x38] sm:$0xff]
    %v112 = vld [vmem:[#allocation2 + $0x40] sm:$0xff]
    %v113 = vld [vmem:[#allocation2 + $0x48] sm:$0xff]
    %v114 = vld [vmem:[#allocation2 + $0x50] sm:$0xff]
    %v115 = vld [vmem:[#allocation2 + $0x58] sm:$0xff]
    %v116 = vld [vmem:[#allocation2 + $0x60] sm:$0xff]
    %v117 = vld [vmem:[#allocation2 + $0x68] sm:$0xff]
    %v118 = vld [vmem:[#allocation2 + $0x70] sm:$0xff]
    %v119 = vld [vmem:[#allocation2 + $0x78] sm:$0xff]
    %v120 = vld [vmem:[#allocation2 + $0x80] sm:$0xff]
    %v121 = vld [vmem:[#allocation2 + $0x88] sm:$0xff]
    %v122 = vld [vmem:[#allocation2 + $0x90] sm:$0xff]
    %v123 = vld [vmem:[#allocation2 + $0x98] sm:$0xff]
    %v124 = vld [vmem:[#allocation2 + $0xa0] sm:$0xff]
    %v125 = vld [vmem:[#allocation2 + $0xa8] sm:$0xff]
    %v126 = vld [vmem:[#allocation2 + $0xb0] sm:$0xff]
    %v127 = vld [vmem:[#allocation2 + $0xb8] sm:$0xff]
    %v128 = vld [vmem:[#allocation2 + $0xc0] sm:$0xff]
    %v129 = vld [vmem:[#allocation2 + $0xc8] sm:$0xff]
    %v130 = vld [vmem:[#allocation2 + $0xd0] sm:$0xff]
    %v131 = vld [vmem:[#allocation2 + $0xd8] sm:$0xff]
    %v132 = vld [vmem:[#allocation2 + $0xe0] sm:$0xff]
    %v133 = vld [vmem:[#allocation2 + $0xe8] sm:$0xff]
    %v134 = vld [vmem:[#allocation2 + $0xf0] sm:$0xff]
    %v135 = vld [vmem:[#allocation2 + $0xf8] sm:$0xff]
    %v136 = vld [vmem:[#allocation2 + $0x100] sm:$0xff]
    %v137 = vld [vmem:[#allocation2 + $0x108] sm:$0xff]
    %v138 = vld [vmem:[#allocation2 + $0x110] sm:$0xff]
    %v139 = vld [vmem:[#allocation2 + $0x118] sm:$0xff]
    %v140 = vld [vmem:[#allocation2 + $0x120] sm:$0xff]
    %v141 = vld [vmem:[#allocation2 + $0x128] sm:$0xff]
    %v142 = vld [vmem:[#allocation2 + $0x130] sm:$0xff]
    %v143 = vld [vmem:[#allocation2 + $0x138] sm:$0xff]
    %v144 = vld [vmem:[#allocation2 + $0x140] sm:$0xff]
    %v145 = vld [vmem:[#allocation2 + $0x148] sm:$0xff]
    %v146 = vld [vmem:[#allocation2 + $0x150] sm:$0xff]
    %v147 = vld [vmem:[#allocation2 + $0x158] sm:$0xff]
    %v148 = vld [vmem:[#allocation2 + $0x160] sm:$0xff]
    %v149 = vld [vmem:[#allocation2 + $0x168] sm:$0xff]
    %v150 = vld [vmem:[#allocation2 + $0x170] sm:$0xff]
    %v151 = vld [vmem:[#allocation2 + $0x178] sm:$0xff]
    %v152 = vld [vmem:[#allocation2 + $0x180] sm:$0xff]
    %v153 = vld [vmem:[#allocation2 + $0x188] sm:$0xff]
    %v154 = vld [vmem:[#allocation2 + $0x190] sm:$0xff]
    %v155 = vld [vmem:[#allocation2 + $0x198] sm:$0xff]
    %v156 = vld [vmem:[#allocation2 + $0x1a0] sm:$0xff]
    %v157 = vld [vmem:[#allocation2 + $0x1a8] sm:$0xff]
    %v158 = vld [vmem:[#allocation2 + $0x1b0] sm:$0xff]
    %v159 = vld [vmem:[#allocation2 + $0x1b8] sm:$0xff]
    %v160 = vld [vmem:[#allocation2 + $0x1c0] sm:$0xff]
    %v161 = vld [vmem:[#allocation2 + $0x1c8] sm:$0xff]
    %v162 = vld [vmem:[#allocation2 + $0x1d0] sm:$0xff]
    %v163 = vld [vmem:[#allocation2 + $0x1d8] sm:$0xff]
    %v164 = vld [vmem:[#allocation2 + $0x1e0] sm:$0xff]
    %v165 = vld [vmem:[#allocation2 + $0x1e8] sm:$0xff]
    %v166 = vld [vmem:[#allocation2 + $0x1f0] sm:$0xff]
    %v167 = vld [vmem:[#allocation2 + $0x1f8] sm:$0xff]
    %v168 = vld [vmem:[#allocation3] sm:$0xff]
    %v169 = vld [vmem:[#allocation3 + $0x8] sm:$0xff]
    %v170 = vld [vmem:[#allocation3 + $0x10] sm:$0xff]
    %v171 = vld [vmem:[#allocation3 + $0x18] sm:$0xff]
    %v172 = vld [vmem:[#allocation3 + $0x20] sm:$0xff]
    %v173 = vld [vmem:[#allocation3 + $0x28] sm:$0xff]
    %v174 = vld [vmem:[#allocation3 + $0x30] sm:$0xff]
    %v175 = vld [vmem:[#allocation3 + $0x38] sm:$0xff]
    %v176 = vld [vmem:[#allocation3 + $0x40] sm:$0xff]
    %v177 = vld [vmem:[#allocation3 + $0x48] sm:$0xff]
    %v178 = vld [vmem:[#allocation3 + $0x50] sm:$0xff]
    %v179 = vld [vmem:[#allocation3 + $0x58] sm:$0xff]
    %v180 = vld [vmem:[#allocation3 + $0x60] sm:$0xff]
    %v181 = vld [vmem:[#allocation3 + $0x68] sm:$0xff]
    %v182 = vld [vmem:[#allocation3 + $0x70] sm:$0xff]
    %v183 = vld [vmem:[#allocation3 + $0x78] sm:$0xff]
    %v184 = vld [vmem:[#allocation3 + $0x80] sm:$0xff]
    %v185 = vld [vmem:[#allocation3 + $0x88] sm:$0xff]
    %v186 = vld [vmem:[#allocation3 + $0x90] sm:$0xff]
    %v187 = vld [vmem:[#allocation3 + $0x98] sm:$0xff]
    %v188 = vld [vmem:[#allocation3 + $0xa0] sm:$0xff]
    %v189 = vld [vmem:[#allocation3 + $0xa8] sm:$0xff]
    %v190 = vld [vmem:[#allocation3 + $0xb0] sm:$0xff]
    %v191 = vld [vmem:[#allocation3 + $0xb8] sm:$0xff]
    %v192 = vld [vmem:[#allocation3 + $0xc0] sm:$0xff]
    %v193 = vld [vmem:[#allocation3 + $0xc8] sm:$0xff]
    %v194 = vld [vmem:[#allocation3 + $0xd0] sm:$0xff]
    %v195 = vld [vmem:[#allocation3 + $0xd8] sm:$0xff]
    %v196 = vld [vmem:[#allocation3 + $0xe0] sm:$0xff]
    %v197 = vld [vmem:[#allocation3 + $0xe8] sm:$0xff]
    %v198 = vld [vmem:[#allocation3 + $0xf0] sm:$0xff]
    %v199 = vld [vmem:[#allocation3 + $0xf8] sm:$0xff]
    %v200 = vld [vmem:[#allocation3 + $0x100] sm:$0xff]
    %v201 = vld [vmem:[#allocation3 + $0x108] sm:$0xff]
    %v202 = vld [vmem:[#allocation3 + $0x110] sm:$0xff]
    %v203 = vld [vmem:[#allocation3 + $0x118] sm:$0xff]
    %v204 = vld [vmem:[#allocation3 + $0x120] sm:$0xff]
    %v205 = vld [vmem:[#allocation3 + $0x128] sm:$0xff]
    %v206 = vld [vmem:[#allocation3 + $0x130] sm:$0xff]
    %v207 = vld [vmem:[#allocation3 + $0x138] sm:$0xff]
    %v208 = vld [vmem:[#allocation3 + $0x140] sm:$0xff]
    %v209 = vld [vmem:[#allocation3 + $0x148] sm:$0xff]
    %v210 = vld [vmem:[#allocation3 + $0x150] sm:$0xff]
    %v211 = vld [vmem:[#allocation3 + $0x158] sm:$0xff]
    %v212 = vld [vmem:[#allocation3 + $0x160] sm:$0xff]
    %v213 = vld [vmem:[#allocation3 + $0x168] sm:$0xff]
    %v214 = vld [vmem:[#allocation3 + $0x170] sm:$0xff]
    %v215 = vld [vmem:[#allocation3 + $0x178] sm:$0xff]
    %v216 = vld [vmem:[#allocation3 + $0x180] sm:$0xff]
    %v217 = vld [vmem:[#allocation3 + $0x188] sm:$0xff]
    %v218 = vld [vmem:[#allocation3 + $0x190] sm:$0xff]
    %v219 = vld [vmem:[#allocation3 + $0x198] sm:$0xff]
    %v220 = vld [vmem:[#allocation3 + $0x1a0] sm:$0xff]
    %v221 = vld [vmem:[#allocation3 + $0x1a8] sm:$0xff]
    %v222 = vld [vmem:[#allocation3 + $0x1b0] sm:$0xff]
    %v223 = vld [vmem:[#allocation3 + $0x1b8] sm:$0xff]
    %v224 = vld [vmem:[#allocation3 + $0x1c0] sm:$0xff]
    %v225 = vld [vmem:[#allocation3 + $0x1c8] sm:$0xff]
    %v226 = vld [vmem:[#allocation3 + $0x1d0] sm:$0xff]
    %v227 = vld [vmem:[#allocation3 + $0x1d8] sm:$0xff]
    %v228 = vld [vmem:[#allocation3 + $0x1e0] sm:$0xff]
    %v229 = vld [vmem:[#allocation3 + $0x1e8] sm:$0xff]
    %v230 = vld [vmem:[#allocation3 + $0x1f0] sm:$0xff]
    %v231 = vld [vmem:[#allocation3 + $0x1f8] sm:$0xff]
    %v232 = vld [vmem:[%s1] sm:$0xf]
    %v233 = vld [vmem:[%s1 + $0x4] sm:$0xf]
    %v234 = vld [vmem:[%s1 + $0x8] sm:$0xf]
    %v235 = vld [vmem:[%s1 + $0xc] sm:$0xf]
    %v236 = vld [vmem:[%s1 + $0x10] sm:$0xf]
    %v237 = vld [vmem:[%s1 + $0x14] sm:$0xf]
    %v238 = vld [vmem:[%s1 + $0x18] sm:$0xf]
    %v239 = vld [vmem:[%s1 + $0x1c] sm:$0xf]
    %v240 = vld [vmem:[%s1 + $0x20] sm:$0xf]
    %v241 = vld [vmem:[%s1 + $0x24] sm:$0xf]
    %v242 = vld [vmem:[%s1 + $0x28] sm:$0xf]
    %v243 = vld [vmem:[%s1 + $0x2c] sm:$0xf]
    %v244 = vld [vmem:[%s1 + $0x30] sm:$0xf]
    %v245 = vld [vmem:[%s1 + $0x34] sm:$0xf]
    %v246 = vld [vmem:[%s1 + $0x38] sm:$0xf]
    %v247 = vld [vmem:[%s1 + $0x3c] sm:$0xf]
    %v248 = vld [vmem:[%s1 + $0x40] sm:$0xf]
    %v249 = vld [vmem:[%s1 + $0x44] sm:$0xf]
    %v250 = vld [vmem:[%s1 + $0x48] sm:$0xf]
    %v251 = vld [vmem:[%s1 + $0x4c] sm:$0xf]
    %v252 = vld [vmem:[%s1 + $0x50] sm:$0xf]
    %v253 = vld [vmem:[%s1 + $0x54] sm:$0xf]
    %v254 = vld [vmem:[%s1 + $0x58] sm:$0xf]
    %v255 = vld [vmem:[%s1 + $0x5c] sm:$0xf]
    %v256 = vld [vmem:[%s1 + $0x60] sm:$0xf]
    %v257 = vld [vmem:[%s1 + $0x64] sm:$0xf]
    %v258 = vld [vmem:[%s1 + $0x68] sm:$0xf]
    %v259 = vld [vmem:[%s1 + $0x6c] sm:$0xf]
    %v260 = vld [vmem:[%s1 + $0x70] sm:$0xf]
    %v261 = vld [vmem:[%s1 + $0x74] sm:$0xf]
    %v262 = vld [vmem:[%s1 + $0x78] sm:$0xf]
    %v263 = vld [vmem:[%s1 + $0x7c] sm:$0xf]
    %v328 = vunpack.c.l.b16 %v168
    %v329 = vunpack.c.h.b16 %v168
    %v330 = vunpack.c.l.b16 %v169
    %v331 = vunpack.c.h.b16 %v169
    %v332 = vunpack.c.l.b16 %v170
    %v333 = vunpack.c.h.b16 %v170
    %v334 = vunpack.c.l.b16 %v171
    %v335 = vunpack.c.h.b16 %v171
    %v336 = vunpack.c.l.b16 %v172
    %v337 = vunpack.c.h.b16 %v172
    %v338 = vunpack.c.l.b16 %v173
    %v339 = vunpack.c.h.b16 %v173
    %v340 = vunpack.c.l.b16 %v174
    %v341 = vunpack.c.h.b16 %v174
    %v342 = vunpack.c.l.b16 %v175
    %v343 = vunpack.c.h.b16 %v175
    %v344 = vunpack.c.l.b16 %v176
    %v345 = vunpack.c.h.b16 %v176
    %v346 = vunpack.c.l.b16 %v177
    %v347 = vunpack.c.h.b16 %v177
    %v348 = vunpack.c.l.b16 %v178
    %v349 = vunpack.c.h.b16 %v178
    %v350 = vunpack.c.l.b16 %v179
    %v351 = vunpack.c.h.b16 %v179
    %v352 = vunpack.c.l.b16 %v180
    %v353 = vunpack.c.h.b16 %v180
    %v354 = vunpack.c.l.b16 %v181
    %v355 = vunpack.c.h.b16 %v181
    %v356 = vunpack.c.l.b16 %v182
    %v357 = vunpack.c.h.b16 %v182
    %v358 = vunpack.c.l.b16 %v183
    %v359 = vunpack.c.h.b16 %v183
    %v360 = vunpack.c.l.b16 %v184
    %v361 = vunpack.c.h.b16 %v184
    %v362 = vunpack.c.l.b16 %v185
    %v363 = vunpack.c.h.b16 %v185
    %v364 = vunpack.c.l.b16 %v186
    %v365 = vunpack.c.h.b16 %v186
    %v366 = vunpack.c.l.b16 %v187
    %v367 = vunpack.c.h.b16 %v187
    %v368 = vunpack.c.l.b16 %v188
    %v369 = vunpack.c.h.b16 %v188
    %v370 = vunpack.c.l.b16 %v189
    %v371 = vunpack.c.h.b16 %v189
    %v372 = vunpack.c.l.b16 %v190
    %v373 = vunpack.c.h.b16 %v190
    %v374 = vunpack.c.l.b16 %v191
    %v375 = vunpack.c.h.b16 %v191
    %v376 = vunpack.c.l.b16 %v192
    %v377 = vunpack.c.h.b16 %v192
    %v378 = vunpack.c.l.b16 %v193
    %v379 = vunpack.c.h.b16 %v193
    %v380 = vunpack.c.l.b16 %v194
    %v381 = vunpack.c.h.b16 %v194
    %v382 = vunpack.c.l.b16 %v195
    %v383 = vunpack.c.h.b16 %v195
    %v384 = vunpack.c.l.b16 %v196
    %v385 = vunpack.c.h.b16 %v196
    %v386 = vunpack.c.l.b16 %v197
    %v387 = vunpack.c.h.b16 %v197
    %v388 = vunpack.c.l.b16 %v198
    %v389 = vunpack.c.h.b16 %v198
    %v390 = vunpack.c.l.b16 %v199
    %v391 = vunpack.c.h.b16 %v199
    %v392 = vunpack.c.l.b16 %v200
    %v393 = vunpack.c.h.b16 %v200
    %v394 = vunpack.c.l.b16 %v201
    %v395 = vunpack.c.h.b16 %v201
    %v396 = vunpack.c.l.b16 %v202
    %v397 = vunpack.c.h.b16 %v202
    %v398 = vunpack.c.l.b16 %v203
    %v399 = vunpack.c.h.b16 %v203
    %v400 = vunpack.c.l.b16 %v204
    %v401 = vunpack.c.h.b16 %v204
    %v402 = vunpack.c.l.b16 %v205
    %v403 = vunpack.c.h.b16 %v205
    %v404 = vunpack.c.l.b16 %v206
    %v405 = vunpack.c.h.b16 %v206
    %v406 = vunpack.c.l.b16 %v207
    %v407 = vunpack.c.h.b16 %v207
    %v408 = vunpack.c.l.b16 %v208
    %v409 = vunpack.c.h.b16 %v208
    %v410 = vunpack.c.l.b16 %v209
    %v411 = vunpack.c.h.b16 %v209
    %v412 = vunpack.c.l.b16 %v210
    %v413 = vunpack.c.h.b16 %v210
    %v414 = vunpack.c.l.b16 %v211
    %v415 = vunpack.c.h.b16 %v211
    %v416 = vunpack.c.l.b16 %v212
    %v417 = vunpack.c.h.b16 %v212
    %v418 = vunpack.c.l.b16 %v213
    %v419 = vunpack.c.h.b16 %v213
    %v420 = vunpack.c.l.b16 %v214
    %v421 = vunpack.c.h.b16 %v214
    %v422 = vunpack.c.l.b16 %v215
    %v423 = vunpack.c.h.b16 %v215
    %v424 = vunpack.c.l.b16 %v216
    %v425 = vunpack.c.h.b16 %v216
    %v426 = vunpack.c.l.b16 %v217
    %v427 = vunpack.c.h.b16 %v217
    %v428 = vunpack.c.l.b16 %v218
    %v429 = vunpack.c.h.b16 %v218
    %v430 = vunpack.c.l.b16 %v219
    %v431 = vunpack.c.h.b16 %v219
    %v432 = vunpack.c.l.b16 %v220
    %v433 = vunpack.c.h.b16 %v220
    %v434 = vunpack.c.l.b16 %v221
    %v435 = vunpack.c.h.b16 %v221
    %v436 = vunpack.c.l.b16 %v222
    %v437 = vunpack.c.h.b16 %v222
    %v438 = vunpack.c.l.b16 %v223
    %v439 = vunpack.c.h.b16 %v223
    %v440 = vunpack.c.l.b16 %v224
    %v441 = vunpack.c.h.b16 %v224
    %v442 = vunpack.c.l.b16 %v225
    %v443 = vunpack.c.h.b16 %v225
    %v444 = vunpack.c.l.b16 %v226
    %v445 = vunpack.c.h.b16 %v226
    %v446 = vunpack.c.l.b16 %v227
    %v447 = vunpack.c.h.b16 %v227
    %v448 = vunpack.c.l.b16 %v228
    %v449 = vunpack.c.h.b16 %v228
    %v450 = vunpack.c.l.b16 %v229
    %v451 = vunpack.c.h.b16 %v229
    %v452 = vunpack.c.l.b16 %v230
    %v453 = vunpack.c.h.b16 %v230
    %v454 = vunpack.c.l.b16 %v231
    %v455 = vunpack.c.h.b16 %v231
    %v456 = vpack.c.b16 %v330, %v328
    %v457 = vpack.c.b16 %v331, %v329
    %v458 = vpack.c.b16 %v334, %v332
    %v459 = vpack.c.b16 %v335, %v333
    %v460 = vpack.c.b16 %v338, %v336
    %v461 = vpack.c.b16 %v339, %v337
    %v462 = vpack.c.b16 %v342, %v340
    %v463 = vpack.c.b16 %v343, %v341
    %v464 = vpack.c.b16 %v346, %v344
    %v465 = vpack.c.b16 %v347, %v345
    %v466 = vpack.c.b16 %v350, %v348
    %v467 = vpack.c.b16 %v351, %v349
    %v468 = vpack.c.b16 %v354, %v352
    %v469 = vpack.c.b16 %v355, %v353
    %v470 = vpack.c.b16 %v358, %v356
    %v471 = vpack.c.b16 %v359, %v357
    %v472 = vpack.c.b16 %v362, %v360
    %v473 = vpack.c.b16 %v363, %v361
    %v474 = vpack.c.b16 %v366, %v364
    %v475 = vpack.c.b16 %v367, %v365
    %v476 = vpack.c.b16 %v370, %v368
    %v477 = vpack.c.b16 %v371, %v369
    %v478 = vpack.c.b16 %v374, %v372
    %v479 = vpack.c.b16 %v375, %v373
    %v480 = vpack.c.b16 %v378, %v376
    %v481 = vpack.c.b16 %v379, %v377
    %v482 = vpack.c.b16 %v382, %v380
    %v483 = vpack.c.b16 %v383, %v381
    %v484 = vpack.c.b16 %v386, %v384
    %v485 = vpack.c.b16 %v387, %v385
    %v486 = vpack.c.b16 %v390, %v388
    %v487 = vpack.c.b16 %v391, %v389
    %v488 = vpack.c.b16 %v394, %v392
    %v489 = vpack.c.b16 %v395, %v393
    %v490 = vpack.c.b16 %v398, %v396
    %v491 = vpack.c.b16 %v399, %v397
    %v492 = vpack.c.b16 %v402, %v400
    %v493 = vpack.c.b16 %v403, %v401
    %v494 = vpack.c.b16 %v406, %v404
    %v495 = vpack.c.b16 %v407, %v405
    %v496 = vpack.c.b16 %v410, %v408
    %v497 = vpack.c.b16 %v411, %v409
    %v498 = vpack.c.b16 %v414, %v412
    %v499 = vpack.c.b16 %v415, %v413
    %v500 = vpack.c.b16 %v418, %v416
    %v501 = vpack.c.b16 %v419, %v417
    %v502 = vpack.c.b16 %v422, %v420
    %v503 = vpack.c.b16 %v423, %v421
    %v504 = vpack.c.b16 %v426, %v424
    %v505 = vpack.c.b16 %v427, %v425
    %v506 = vpack.c.b16 %v430, %v428
    %v507 = vpack.c.b16 %v431, %v429
    %v508 = vpack.c.b16 %v434, %v432
    %v509 = vpack.c.b16 %v435, %v433
    %v510 = vpack.c.b16 %v438, %v436
    %v511 = vpack.c.b16 %v439, %v437
    %v512 = vpack.c.b16 %v442, %v440
    %v513 = vpack.c.b16 %v443, %v441
    %v514 = vpack.c.b16 %v446, %v444
    %v515 = vpack.c.b16 %v447, %v445
    %v516 = vpack.c.b16 %v450, %v448
    %v517 = vpack.c.b16 %v451, %v449
    %v518 = vpack.c.b16 %v454, %v452
    %v519 = vpack.c.b16 %v455, %v453
    %v616 = vunpack.c.l.b16 %v232
    %v617 = vunpack.c.l.b16 %v233
    %v618 = vunpack.c.l.b16 %v234
    %v619 = vunpack.c.l.b16 %v235
    %v620 = vunpack.c.l.b16 %v236
    %v621 = vunpack.c.l.b16 %v237
    %v622 = vunpack.c.l.b16 %v238
    %v623 = vunpack.c.l.b16 %v239
    %v624 = vunpack.c.l.b16 %v240
    %v625 = vunpack.c.l.b16 %v241
    %v626 = vunpack.c.l.b16 %v242
    %v627 = vunpack.c.l.b16 %v243
    %v628 = vunpack.c.l.b16 %v244
    %v629 = vunpack.c.l.b16 %v245
    %v630 = vunpack.c.l.b16 %v246
    %v631 = vunpack.c.l.b16 %v247
    %v632 = vunpack.c.l.b16 %v248
    %v633 = vunpack.c.l.b16 %v249
    %v634 = vunpack.c.l.b16 %v250
    %v635 = vunpack.c.l.b16 %v251
    %v636 = vunpack.c.l.b16 %v252
    %v637 = vunpack.c.l.b16 %v253
    %v638 = vunpack.c.l.b16 %v254
    %v639 = vunpack.c.l.b16 %v255
    %v640 = vunpack.c.l.b16 %v256
    %v641 = vunpack.c.l.b16 %v257
    %v642 = vunpack.c.l.b16 %v258
    %v643 = vunpack.c.l.b16 %v259
    %v644 = vunpack.c.l.b16 %v260
    %v645 = vunpack.c.l.b16 %v261
    %v646 = vunpack.c.l.b16 %v262
    %v647 = vunpack.c.l.b16 %v263
    %v648 = vpack.c.b16 %v617, %v616
    %v649 = vpack.c.b16 %v619, %v618
    %v650 = vpack.c.b16 %v621, %v620
    %v651 = vpack.c.b16 %v623, %v622
    %v652 = vpack.c.b16 %v625, %v624
    %v653 = vpack.c.b16 %v627, %v626
    %v654 = vpack.c.b16 %v629, %v628
    %v655 = vpack.c.b16 %v631, %v630
    %v656 = vpack.c.b16 %v633, %v632
    %v657 = vpack.c.b16 %v635, %v634
    %v658 = vpack.c.b16 %v637, %v636
    %v659 = vpack.c.b16 %v639, %v638
    %v660 = vpack.c.b16 %v641, %v640
    %v661 = vpack.c.b16 %v643, %v642
    %v662 = vpack.c.b16 %v645, %v644
    %v663 = vpack.c.b16 %v647, %v646
    %680 = vmatprep.subr.bf16.mxu0 0
    %681 = vmatpush1.bf16.msra.mxu0 %v648
    %682 = vmatprep.subr.bf16.mxu0 0
    %683 = vmatpush1.bf16.msra.mxu0 %v649
    %684 = vmatprep.subr.bf16.mxu0 0
    %685 = vmatpush1.bf16.msra.mxu0 %v650
    %686 = vmatprep.subr.bf16.mxu0 0
    %687 = vmatpush1.bf16.msra.mxu0 %v651
    %688 = vmatprep.subr.bf16.mxu0 0
    %689 = vmatpush1.bf16.msra.mxu0 %v652
    %690 = vmatprep.subr.bf16.mxu0 0
    %691 = vmatpush1.bf16.msra.mxu0 %v653
    %692 = vmatprep.subr.bf16.mxu0 0
    %693 = vmatpush1.bf16.msra.mxu0 %v654
    %694 = vmatprep.subr.bf16.mxu0 0
    %695 = vmatpush1.bf16.msra.mxu0 %v655
    %696 = vmatprep.subr.bf16.mxu0 0
    %697 = vmatpush1.bf16.msra.mxu0 %v656
    %698 = vmatprep.subr.bf16.mxu0 0
    %699 = vmatpush1.bf16.msra.mxu0 %v657
    %700 = vmatprep.subr.bf16.mxu0 0
    %701 = vmatpush1.bf16.msra.mxu0 %v658
    %702 = vmatprep.subr.bf16.mxu0 0
    %703 = vmatpush1.bf16.msra.mxu0 %v659
    %704 = vmatprep.subr.bf16.mxu0 0
    %705 = vmatpush1.bf16.msra.mxu0 %v660
    %706 = vmatprep.subr.bf16.mxu0 0
    %707 = vmatpush1.bf16.msra.mxu0 %v661
    %708 = vmatprep.subr.bf16.mxu0 0
    %709 = vmatpush1.bf16.msra.mxu0 %v662
    %710 = vmatprep.subr.bf16.mxu0 0
    %711 = vmatpush1.bf16.msra.mxu0 %v663
    %712 = vmatprep.mubr.bf16.mxu0 %v457
    %713 = vmatmul.mubr.bf16.gmra.mrb[0].mxu0 %v456
    %v714 = vpop.f32.mrb[0].mxu0
    %v715 = vadd.f32 0.0, %v714
    %v716 = vpop.f32.mrb[0].mxu0
    %v717 = vpop.f32.mrb[0].mxu0
    %v718 = vadd.f32 0.0, %v717
    %v719 = vpop.f32.mrb[0].mxu0
    %720 = vmatprep.mubr.bf16.mxu0 %v459
    %721 = vmatmul.mubr.bf16.gmra.mrb[0].mxu0 %v458
    %v722 = vpop.f32.mrb[0].mxu0
    %v723 = vadd.f32 0.0, %v722
    %v724 = vpop.f32.mrb[0].mxu0
    %v725 = vpop.f32.mrb[0].mxu0
    %v726 = vadd.f32 0.0, %v725
    %v727 = vpop.f32.mrb[0].mxu0
    %728 = vmatprep.mubr.bf16.mxu0 %v461
    %729 = vmatmul.mubr.bf16.gmra.mrb[0].mxu0 %v460
    %v730 = vpop.f32.mrb[0].mxu0
    %v731 = vadd.f32 0.0, %v730
    %v732 = vpop.f32.mrb[0].mxu0
    %v733 = vpop.f32.mrb[0].mxu0
    %v734 = vadd.f32 0.0, %v733
    %v735 = vpop.f32.mrb[0].mxu0
    %736 = vmatprep.mubr.bf16.mxu0 %v463
    %737 = vmatmul.mubr.bf16.gmra.mrb[0].mxu0 %v462
    %v738 = vpop.f32.mrb[0].mxu0
    %v739 = vadd.f32 0.0, %v738
    %v740 = vpop.f32.mrb[0].mxu0
    %v741 = vpop.f32.mrb[0].mxu0
    %v742 = vadd.f32 0.0, %v741
    %v743 = vpop.f32.mrb[0].mxu0
    %744 = vmatprep.mubr.bf16.mxu0 %v465
    %745 = vmatmul.mubr.bf16.gmra.mrb[0].mxu0 %v464
    %v746 = vpop.f32.mrb[0].mxu0
    %v747 = vadd.f32 0.0, %v746
    %v748 = vpop.f32.mrb[0].mxu0
    %v749 = vpop.f32.mrb[0].mxu0
    %v750 = vadd.f32 0.0, %v749
    %v751 = vpop.f32.mrb[0].mxu0
    %752 = vmatprep.mubr.bf16.mxu0 %v467
    %753 = vmatmul.mubr.bf16.gmra.mrb[0].mxu0 %v466
    %v754 = vpop.f32.mrb[0].mxu0
    %v755 = vadd.f32 0.0, %v754
    %v756 = vpop.f32.mrb[0].mxu0
    %v757 = vpop.f32.mrb[0].mxu0
    %v758 = vadd.f32 0.0, %v757
    %v759 = vpop.f32.mrb[0].mxu0
    %760 = vmatprep.mubr.bf16.mxu0 %v469
    %761 = vmatmul.mubr.bf16.gmra.mrb[0].mxu0 %v468
    %v762 = vpop.f32.mrb[0].mxu0
    %v763 = vadd.f32 0.0, %v762
    %v764 = vpop.f32.mrb[0].mxu0
    %v765 = vpop.f32.mrb[0].mxu0
    %v766 = vadd.f32 0.0, %v765
    %v767 = vpop.f32.mrb[0].mxu0
    %768 = vmatprep.mubr.bf16.mxu0 %v471
    %769 = vmatmul.mubr.bf16.gmra.mrb[0].mxu0 %v470
    %v770 = vpop.f32.mrb[0].mxu0
    %v771 = vadd.f32 0.0, %v770
    %v772 = vpop.f32.mrb[0].mxu0
    %v773 = vpop.f32.mrb[0].mxu0
    %v774 = vadd.f32 0.0, %v773
    %v775 = vpop.f32.mrb[0].mxu0
    %776 = vmatprep.mubr.bf16.mxu0 %v473
    %777 = vmatmul.mubr.bf16.gmra.mrb[0].mxu0 %v472
    %v778 = vpop.f32.mrb[0].mxu0
    %v779 = vadd.f32 0.0, %v778
    %v780 = vpop.f32.mrb[0].mxu0
    %v781 = vpop.f32.mrb[0].mxu0
    %v782 = vadd.f32 0.0, %v781
    %v783 = vpop.f32.mrb[0].mxu0
    %784 = vmatprep.mubr.bf16.mxu0 %v475
    %785 = vmatmul.mubr.bf16.gmra.mrb[0].mxu0 %v474
    %v786 = vpop.f32.mrb[0].mxu0
    %v787 = vadd.f32 0.0, %v786
    %v788 = vpop.f32.mrb[0].mxu0
    %v789 = vpop.f32.mrb[0].mxu0
    %v790 = vadd.f32 0.0, %v789
    %v791 = vpop.f32.mrb[0].mxu0
    %792 = vmatprep.mubr.bf16.mxu0 %v477
    %793 = vmatmul.mubr.bf16.gmra.mrb[0].mxu0 %v476
    %v794 = vpop.f32.mrb[0].mxu0
    %v795 = vadd.f32 0.0, %v794
    %v796 = vpop.f32.mrb[0].mxu0
    %v797 = vpop.f32.mrb[0].mxu0
    %v798 = vadd.f32 0.0, %v797
    %v799 = vpop.f32.mrb[0].mxu0
    %800 = vmatprep.mubr.bf16.mxu0 %v479
    %801 = vmatmul.mubr.bf16.gmra.mrb[0].mxu0 %v478
    %v802 = vpop.f32.mrb[0].mxu0
    %v803 = vadd.f32 0.0, %v802
    %v804 = vpop.f32.mrb[0].mxu0
    %v805 = vpop.f32.mrb[0].mxu0
    %v806 = vadd.f32 0.0, %v805
    %v807 = vpop.f32.mrb[0].mxu0
    %808 = vmatprep.mubr.bf16.mxu0 %v481
    %809 = vmatmul.mubr.bf16.gmra.mrb[0].mxu0 %v480
    %v810 = vpop.f32.mrb[0].mxu0
    %v811 = vadd.f32 0.0, %v810
    %v812 = vpop.f32.mrb[0].mxu0
    %v813 = vpop.f32.mrb[0].mxu0
    %v814 = vadd.f32 0.0, %v813
    %v815 = vpop.f32.mrb[0].mxu0
    %816 = vmatprep.mubr.bf16.mxu0 %v483
    %817 = vmatmul.mubr.bf16.gmra.mrb[0].mxu0 %v482
    %v818 = vpop.f32.mrb[0].mxu0
    %v819 = vadd.f32 0.0, %v818
    %v820 = vpop.f32.mrb[0].mxu0
    %v821 = vpop.f32.mrb[0].mxu0
    %v822 = vadd.f32 0.0, %v821
    %v823 = vpop.f32.mrb[0].mxu0
    %824 = vmatprep.mubr.bf16.mxu0 %v485
    %825 = vmatmul.mubr.bf16.gmra.mrb[0].mxu0 %v484
    %v826 = vpop.f32.mrb[0].mxu0
    %v827 = vadd.f32 0.0, %v826
    %v828 = vpop.f32.mrb[0].mxu0
    %v829 = vpop.f32.mrb[0].mxu0
    %v830 = vadd.f32 0.0, %v829
    %v831 = vpop.f32.mrb[0].mxu0
    %832 = vmatprep.mubr.bf16.mxu0 %v487
    %833 = vmatmul.mubr.bf16.gmra.mrb[0].mxu0 %v486
    %v834 = vpop.f32.mrb[0].mxu0
    %v835 = vadd.f32 0.0, %v834
    %v836 = vpop.f32.mrb[0].mxu0
    %v837 = vpop.f32.mrb[0].mxu0
    %v838 = vadd.f32 0.0, %v837
    %v839 = vpop.f32.mrb[0].mxu0
    %840 = vmatprep.mubr.bf16.mxu0 %v489
    %841 = vmatmul.mubr.bf16.gmra.mrb[0].mxu0 %v488
    %v842 = vpop.f32.mrb[0].mxu0
    %v843 = vadd.f32 0.0, %v842
    %v844 = vpop.f32.mrb[0].mxu0
    %v845 = vpop.f32.mrb[0].mxu0
    %v846 = vadd.f32 0.0, %v845
    %v847 = vpop.f32.mrb[0].mxu0
    %848 = vmatprep.mubr.bf16.mxu0 %v491
    %849 = vmatmul.mubr.bf16.gmra.mrb[0].mxu0 %v490
    %v850 = vpop.f32.mrb[0].mxu0
    %v851 = vadd.f32 0.0, %v850
    %v852 = vpop.f32.mrb[0].mxu0
    %v853 = vpop.f32.mrb[0].mxu0
    %v854 = vadd.f32 0.0, %v853
    %v855 = vpop.f32.mrb[0].mxu0
    %856 = vmatprep.mubr.bf16.mxu0 %v493
    %857 = vmatmul.mubr.bf16.gmra.mrb[0].mxu0 %v492
    %v858 = vpop.f32.mrb[0].mxu0
    %v859 = vadd.f32 0.0, %v858
    %v860 = vpop.f32.mrb[0].mxu0
    %v861 = vpop.f32.mrb[0].mxu0
    %v862 = vadd.f32 0.0, %v861
    %v863 = vpop.f32.mrb[0].mxu0
    %864 = vmatprep.mubr.bf16.mxu0 %v495
    %865 = vmatmul.mubr.bf16.gmra.mrb[0].mxu0 %v494
    %v866 = vpop.f32.mrb[0].mxu0
    %v867 = vadd.f32 0.0, %v866
    %v868 = vpop.f32.mrb[0].mxu0
    %v869 = vpop.f32.mrb[0].mxu0
    %v870 = vadd.f32 0.0, %v869
    %v871 = vpop.f32.mrb[0].mxu0
    %872 = vmatprep.mubr.bf16.mxu0 %v497
    %873 = vmatmul.mubr.bf16.gmra.mrb[0].mxu0 %v496
    %v874 = vpop.f32.mrb[0].mxu0
    %v875 = vadd.f32 0.0, %v874
    %v876 = vpop.f32.mrb[0].mxu0
    %v877 = vpop.f32.mrb[0].mxu0
    %v878 = vadd.f32 0.0, %v877
    %v879 = vpop.f32.mrb[0].mxu0
    %880 = vmatprep.mubr.bf16.mxu0 %v499
    %881 = vmatmul.mubr.bf16.gmra.mrb[0].mxu0 %v498
    %v882 = vpop.f32.mrb[0].mxu0
    %v883 = vadd.f32 0.0, %v882
    %v884 = vpop.f32.mrb[0].mxu0
    %v885 = vpop.f32.mrb[0].mxu0
    %v886 = vadd.f32 0.0, %v885
    %v887 = vpop.f32.mrb[0].mxu0
    %888 = vmatprep.mubr.bf16.mxu0 %v501
    %889 = vmatmul.mubr.bf16.gmra.mrb[0].mxu0 %v500
    %v890 = vpop.f32.mrb[0].mxu0
    %v891 = vadd.f32 0.0, %v890
    %v892 = vpop.f32.mrb[0].mxu0
    %v893 = vpop.f32.mrb[0].mxu0
    %v894 = vadd.f32 0.0, %v893
    %v895 = vpop.f32.mrb[0].mxu0
    %896 = vmatprep.mubr.bf16.mxu0 %v503
    %897 = vmatmul.mubr.bf16.gmra.mrb[0].mxu0 %v502
    %v898 = vpop.f32.mrb[0].mxu0
    %v899 = vadd.f32 0.0, %v898
    %v900 = vpop.f32.mrb[0].mxu0
    %v901 = vpop.f32.mrb[0].mxu0
    %v902 = vadd.f32 0.0, %v901
    %v903 = vpop.f32.mrb[0].mxu0
    %904 = vmatprep.mubr.bf16.mxu0 %v505
    %905 = vmatmul.mubr.bf16.gmra.mrb[0].mxu0 %v504
    %v906 = vpop.f32.mrb[0].mxu0
    %v907 = vadd.f32 0.0, %v906
    %v908 = vpop.f32.mrb[0].mxu0
    %v909 = vpop.f32.mrb[0].mxu0
    %v910 = vadd.f32 0.0, %v909
    %v911 = vpop.f32.mrb[0].mxu0
    %912 = vmatprep.mubr.bf16.mxu0 %v507
    %913 = vmatmul.mubr.bf16.gmra.mrb[0].mxu0 %v506
    %v914 = vpop.f32.mrb[0].mxu0
    %v915 = vadd.f32 0.0, %v914
    %v916 = vpop.f32.mrb[0].mxu0
    %v917 = vpop.f32.mrb[0].mxu0
    %v918 = vadd.f32 0.0, %v917
    %v919 = vpop.f32.mrb[0].mxu0
    %920 = vmatprep.mubr.bf16.mxu0 %v509
    %921 = vmatmul.mubr.bf16.gmra.mrb[0].mxu0 %v508
    %v922 = vpop.f32.mrb[0].mxu0
    %v923 = vadd.f32 0.0, %v922
    %v924 = vpop.f32.mrb[0].mxu0
    %v925 = vpop.f32.mrb[0].mxu0
    %v926 = vadd.f32 0.0, %v925
    %v927 = vpop.f32.mrb[0].mxu0
    %928 = vmatprep.mubr.bf16.mxu0 %v511
    %929 = vmatmul.mubr.bf16.gmra.mrb[0].mxu0 %v510
    %v930 = vpop.f32.mrb[0].mxu0
    %v931 = vadd.f32 0.0, %v930
    %v932 = vpop.f32.mrb[0].mxu0
    %v933 = vpop.f32.mrb[0].mxu0
    %v934 = vadd.f32 0.0, %v933
    %v935 = vpop.f32.mrb[0].mxu0
    %936 = vmatprep.mubr.bf16.mxu0 %v513
    %937 = vmatmul.mubr.bf16.gmra.mrb[0].mxu0 %v512
    %v938 = vpop.f32.mrb[0].mxu0
    %v939 = vadd.f32 0.0, %v938
    %v940 = vpop.f32.mrb[0].mxu0
    %v941 = vpop.f32.mrb[0].mxu0
    %v942 = vadd.f32 0.0, %v941
    %v943 = vpop.f32.mrb[0].mxu0
    %944 = vmatprep.mubr.bf16.mxu0 %v515
    %945 = vmatmul.mubr.bf16.gmra.mrb[0].mxu0 %v514
    %v946 = vpop.f32.mrb[0].mxu0
    %v947 = vadd.f32 0.0, %v946
    %v948 = vpop.f32.mrb[0].mxu0
    %v949 = vpop.f32.mrb[0].mxu0
    %v950 = vadd.f32 0.0, %v949
    %v951 = vpop.f32.mrb[0].mxu0
    %952 = vmatprep.mubr.bf16.mxu0 %v517
    %953 = vmatmul.mubr.bf16.gmra.mrb[0].mxu0 %v516
    %v954 = vpop.f32.mrb[0].mxu0
    %v955 = vadd.f32 0.0, %v954
    %v956 = vpop.f32.mrb[0].mxu0
    %v957 = vpop.f32.mrb[0].mxu0
    %v958 = vadd.f32 0.0, %v957
    %v959 = vpop.f32.mrb[0].mxu0
    %960 = vmatprep.mubr.bf16.mxu0 %v519
    %961 = vmatmul.mubr.bf16.gmra.mrb[0].mxu0 %v518
    %v962 = vpop.f32.mrb[0].mxu0
    %v963 = vadd.f32 0.0, %v962
    %v964 = vpop.f32.mrb[0].mxu0
    %v965 = vpop.f32.mrb[0].mxu0
    %v966 = vadd.f32 0.0, %v965
    %v967 = vpop.f32.mrb[0].mxu0
    %968 = vdwg.mxu0
    %v969 = vadd.f32 %v104, %v715
    %v970 = vadd.f32 %v105, %v718
    %v971 = vadd.f32 %v106, %v723
    %v972 = vadd.f32 %v107, %v726
    %v973 = vadd.f32 %v108, %v731
    %v974 = vadd.f32 %v109, %v734
    %v975 = vadd.f32 %v110, %v739
    %v976 = vadd.f32 %v111, %v742
    %v977 = vadd.f32 %v112, %v747
    %v978 = vadd.f32 %v113, %v750
    %v979 = vadd.f32 %v114, %v755
    %v980 = vadd.f32 %v115, %v758
    %v981 = vadd.f32 %v116, %v763
    %v982 = vadd.f32 %v117, %v766
    %v983 = vadd.f32 %v118, %v771
    %v984 = vadd.f32 %v119, %v774
    %v985 = vadd.f32 %v120, %v779
    %v986 = vadd.f32 %v121, %v782
    %v987 = vadd.f32 %v122, %v787
    %v988 = vadd.f32 %v123, %v790
    %v989 = vadd.f32 %v124, %v795
    %v990 = vadd.f32 %v125, %v798
    %v991 = vadd.f32 %v126, %v803
    %v992 = vadd.f32 %v127, %v806
    %v993 = vadd.f32 %v128, %v811
    %v994 = vadd.f32 %v129, %v814
    %v995 = vadd.f32 %v130, %v819
    %v996 = vadd.f32 %v131, %v822
    %v997 = vadd.f32 %v132, %v827
    %v998 = vadd.f32 %v133, %v830
    %v999 = vadd.f32 %v134, %v835
    %v1000 = vadd.f32 %v135, %v838
    %v1001 = vadd.f32 %v136, %v843
    %v1002 = vadd.f32 %v137, %v846
    %v1003 = vadd.f32 %v138, %v851
    %v1004 = vadd.f32 %v139, %v854
    %v1005 = vadd.f32 %v140, %v859
    %v1006 = vadd.f32 %v141, %v862
    %v1007 = vadd.f32 %v142, %v867
    %v1008 = vadd.f32 %v143, %v870
    %v1009 = vadd.f32 %v144, %v875
    %v1010 = vadd.f32 %v145, %v878
    %v1011 = vadd.f32 %v146, %v883
    %v1012 = vadd.f32 %v147, %v886
    %v1013 = vadd.f32 %v148, %v891
    %v1014 = vadd.f32 %v149, %v894
    %v1015 = vadd.f32 %v150, %v899
    %v1016 = vadd.f32 %v151, %v902
    %v1017 = vadd.f32 %v152, %v907
    %v1018 = vadd.f32 %v153, %v910
    %v1019 = vadd.f32 %v154, %v915
    %v1020 = vadd.f32 %v155, %v918
    %v1021 = vadd.f32 %v156, %v923
    %v1022 = vadd.f32 %v157, %v926
    %v1023 = vadd.f32 %v158, %v931
    %v1024 = vadd.f32 %v159, %v934
    %v1025 = vadd.f32 %v160, %v939
    %v1026 = vadd.f32 %v161, %v942
    %v1027 = vadd.f32 %v162, %v947
    %v1028 = vadd.f32 %v163, %v950
    %v1029 = vadd.f32 %v164, %v955
    %v1030 = vadd.f32 %v165, %v958
    %v1031 = vadd.f32 %v166, %v963
    %v1032 = vadd.f32 %v167, %v966
    %vm1033 = vcmask 523264
    %1034 = vst.msk [vmem:[#allocation2] sm:$0xff] %vm1033, %v969
    %1035 = vst.msk [vmem:[#allocation2 + $0x8] sm:$0xff] %vm1033, %v970
    %1036 = vst.msk [vmem:[#allocation2 + $0x10] sm:$0xff] %vm1033, %v971
    %1037 = vst.msk [vmem:[#allocation2 + $0x18] sm:$0xff] %vm1033, %v972
    %1038 = vst.msk [vmem:[#allocation2 + $0x20] sm:$0xff] %vm1033, %v973
    %1039 = vst.msk [vmem:[#allocation2 + $0x28] sm:$0xff] %vm1033, %v974
    %1040 = vst.msk [vmem:[#allocation2 + $0x30] sm:$0xff] %vm1033, %v975
    %1041 = vst.msk [vmem:[#allocation2 + $0x38] sm:$0xff] %vm1033, %v976
    %1042 = vst.msk [vmem:[#allocation2 + $0x40] sm:$0xff] %vm1033, %v977
    %1043 = vst.msk [vmem:[#allocation2 + $0x48] sm:$0xff] %vm1033, %v978
    %1044 = vst.msk [vmem:[#allocation2 + $0x50] sm:$0xff] %vm1033, %v979
    %1045 = vst.msk [vmem:[#allocation2 + $0x58] sm:$0xff] %vm1033, %v980
    %1046 = vst.msk [vmem:[#allocation2 + $0x60] sm:$0xff] %vm1033, %v981
    %1047 = vst.msk [vmem:[#allocation2 + $0x68] sm:$0xff] %vm1033, %v982
    %1048 = vst.msk [vmem:[#allocation2 + $0x70] sm:$0xff] %vm1033, %v983
    %1049 = vst.msk [vmem:[#allocation2 + $0x78] sm:$0xff] %vm1033, %v984
    %1050 = vst.msk [vmem:[#allocation2 + $0x80] sm:$0xff] %vm1033, %v985
    %1051 = vst.msk [vmem:[#allocation2 + $0x88] sm:$0xff] %vm1033, %v986
    %1052 = vst.msk [vmem:[#allocation2 + $0x90] sm:$0xff] %vm1033, %v987
    %1053 = vst.msk [vmem:[#allocation2 + $0x98] sm:$0xff] %vm1033, %v988
    %1054 = vst.msk [vmem:[#allocation2 + $0xa0] sm:$0xff] %vm1033, %v989
    %1055 = vst.msk [vmem:[#allocation2 + $0xa8] sm:$0xff] %vm1033, %v990
    %1056 = vst.msk [vmem:[#allocation2 + $0xb0] sm:$0xff] %vm1033, %v991
    %1057 = vst.msk [vmem:[#allocation2 + $0xb8] sm:$0xff] %vm1033, %v992
    %1058 = vst.msk [vmem:[#allocation2 + $0xc0] sm:$0xff] %vm1033, %v993
    %1059 = vst.msk [vmem:[#allocation2 + $0xc8] sm:$0xff] %vm1033, %v994
    %1060 = vst.msk [vmem:[#allocation2 + $0xd0] sm:$0xff] %vm1033, %v995
    %1061 = vst.msk [vmem:[#allocation2 + $0xd8] sm:$0xff] %vm1033, %v996
    %1062 = vst.msk [vmem:[#allocation2 + $0xe0] sm:$0xff] %vm1033, %v997
    %1063 = vst.msk [vmem:[#allocation2 + $0xe8] sm:$0xff] %vm1033, %v998
    %1064 = vst.msk [vmem:[#allocation2 + $0xf0] sm:$0xff] %vm1033, %v999
    %1065 = vst.msk [vmem:[#allocation2 + $0xf8] sm:$0xff] %vm1033, %v1000
    %1066 = vst.msk [vmem:[#allocation2 + $0x100] sm:$0xff] %vm1033, %v1001
    %1067 = vst.msk [vmem:[#allocation2 + $0x108] sm:$0xff] %vm1033, %v1002
    %1068 = vst.msk [vmem:[#allocation2 + $0x110] sm:$0xff] %vm1033, %v1003
    %1069 = vst.msk [vmem:[#allocation2 + $0x118] sm:$0xff] %vm1033, %v1004
    %1070 = vst.msk [vmem:[#allocation2 + $0x120] sm:$0xff] %vm1033, %v1005
    %1071 = vst.msk [vmem:[#allocation2 + $0x128] sm:$0xff] %vm1033, %v1006
    %1072 = vst.msk [vmem:[#allocation2 + $0x130] sm:$0xff] %vm1033, %v1007
    %1073 = vst.msk [vmem:[#allocation2 + $0x138] sm:$0xff] %vm1033, %v1008
    %1074 = vst.msk [vmem:[#allocation2 + $0x140] sm:$0xff] %vm1033, %v1009
    %1075 = vst.msk [vmem:[#allocation2 + $0x148] sm:$0xff] %vm1033, %v1010
    %1076 = vst.msk [vmem:[#allocation2 + $0x150] sm:$0xff] %vm1033, %v1011
    %1077 = vst.msk [vmem:[#allocation2 + $0x158] sm:$0xff] %vm1033, %v1012
    %1078 = vst.msk [vmem:[#allocation2 + $0x160] sm:$0xff] %vm1033, %v1013
    %1079 = vst.msk [vmem:[#allocation2 + $0x168] sm:$0xff] %vm1033, %v1014
    %1080 = vst.msk [vmem:[#allocation2 + $0x170] sm:$0xff] %vm1033, %v1015
    %1081 = vst.msk [vmem:[#allocation2 + $0x178] sm:$0xff] %vm1033, %v1016
    %1082 = vst.msk [vmem:[#allocation2 + $0x180] sm:$0xff] %vm1033, %v1017
    %1083 = vst.msk [vmem:[#allocation2 + $0x188] sm:$0xff] %vm1033, %v1018
    %1084 = vst.msk [vmem:[#allocation2 + $0x190] sm:$0xff] %vm1033, %v1019
    %1085 = vst.msk [vmem:[#allocation2 + $0x198] sm:$0xff] %vm1033, %v1020
    %1086 = vst.msk [vmem:[#allocation2 + $0x1a0] sm:$0xff] %vm1033, %v1021
    %1087 = vst.msk [vmem:[#allocation2 + $0x1a8] sm:$0xff] %vm1033, %v1022
    %1088 = vst.msk [vmem:[#allocation2 + $0x1b0] sm:$0xff] %vm1033, %v1023
    %1089 = vst.msk [vmem:[#allocation2 + $0x1b8] sm:$0xff] %vm1033, %v1024
    %1090 = vst.msk [vmem:[#allocation2 + $0x1c0] sm:$0xff] %vm1033, %v1025
    %1091 = vst.msk [vmem:[#allocation2 + $0x1c8] sm:$0xff] %vm1033, %v1026
    %1092 = vst.msk [vmem:[#allocation2 + $0x1d0] sm:$0xff] %vm1033, %v1027
    %1093 = vst.msk [vmem:[#allocation2 + $0x1d8] sm:$0xff] %vm1033, %v1028
    %1094 = vst.msk [vmem:[#allocation2 + $0x1e0] sm:$0xff] %vm1033, %v1029
    %1095 = vst.msk [vmem:[#allocation2 + $0x1e8] sm:$0xff] %vm1033, %v1030
    %1096 = vst.msk [vmem:[#allocation2 + $0x1f0] sm:$0xff] %vm1033, %v1031
    %1097 = vst.msk [vmem:[#allocation2 + $0x1f8] sm:$0xff] %vm1033, %v1032
    // Predicated region
    $region30: #{tpu_custom_call.1} parent=1 // pred_check
      %p1098 = pneg %p35
    $region31: #{tpu_custom_call.1} parent=1 // pred_check_branch
      %1100 = sbr.rel (%p1098) target = $region33
    $region32: #{tpu_custom_call.1} parent=1 // pred_region
      %v1101 = vld [vmem:[#allocation2] sm:$0xff]
      %v1102 = vld [vmem:[#allocation2 + $0x8] sm:$0xff]
      %v1103 = vld [vmem:[#allocation2 + $0x10] sm:$0xff]
      %v1104 = vld [vmem:[#allocation2 + $0x18] sm:$0xff]
      %v1105 = vld [vmem:[#allocation2 + $0x20] sm:$0xff]
      %v1106 = vld [vmem:[#allocation2 + $0x28] sm:$0xff]
      %v1107 = vld [vmem:[#allocation2 + $0x30] sm:$0xff]
      %v1108 = vld [vmem:[#allocation2 + $0x38] sm:$0xff]
      %v1109 = vld [vmem:[#allocation2 + $0x40] sm:$0xff]
      %v1110 = vld [vmem:[#allocation2 + $0x48] sm:$0xff]
      %v1111 = vld [vmem:[#allocation2 + $0x50] sm:$0xff]
      %v1112 = vld [vmem:[#allocation2 + $0x58] sm:$0xff]
      %v1113 = vld [vmem:[#allocation2 + $0x60] sm:$0xff]
      %v1114 = vld [vmem:[#allocation2 + $0x68] sm:$0xff]
      %v1115 = vld [vmem:[#allocation2 + $0x70] sm:$0xff]
      %v1116 = vld [vmem:[#allocation2 + $0x78] sm:$0xff]
      %v1117 = vld [vmem:[#allocation2 + $0x80] sm:$0xff]
      %v1118 = vld [vmem:[#allocation2 + $0x88] sm:$0xff]
      %v1119 = vld [vmem:[#allocation2 + $0x90] sm:$0xff]
      %v1120 = vld [vmem:[#allocation2 + $0x98] sm:$0xff]
      %v1121 = vld [vmem:[#allocation2 + $0xa0] sm:$0xff]
      %v1122 = vld [vmem:[#allocation2 + $0xa8] sm:$0xff]
      %v1123 = vld [vmem:[#allocation2 + $0xb0] sm:$0xff]
      %v1124 = vld [vmem:[#allocation2 + $0xb8] sm:$0xff]
      %v1125 = vld [vmem:[#allocation2 + $0xc0] sm:$0xff]
      %v1126 = vld [vmem:[#allocation2 + $0xc8] sm:$0xff]
      %v1127 = vld [vmem:[#allocation2 + $0xd0] sm:$0xff]
      %v1128 = vld [vmem:[#allocation2 + $0xd8] sm:$0xff]
      %v1129 = vld [vmem:[#allocation2 + $0xe0] sm:$0xff]
      %v1130 = vld [vmem:[#allocation2 + $0xe8] sm:$0xff]
      %v1131 = vld [vmem:[#allocation2 + $0xf0] sm:$0xff]
      %v1132 = vld [vmem:[#allocation2 + $0xf8] sm:$0xff]
      %v1133 = vld [vmem:[#allocation2 + $0x100] sm:$0xff]
      %v1134 = vld [vmem:[#allocation2 + $0x108] sm:$0xff]
      %v1135 = vld [vmem:[#allocation2 + $0x110] sm:$0xff]
      %v1136 = vld [vmem:[#allocation2 + $0x118] sm:$0xff]
      %v1137 = vld [vmem:[#allocation2 + $0x120] sm:$0xff]
      %v1138 = vld [vmem:[#allocation2 + $0x128] sm:$0xff]
      %v1139 = vld [vmem:[#allocation2 + $0x130] sm:$0xff]
      %v1140 = vld [vmem:[#allocation2 + $0x138] sm:$0xff]
      %v1141 = vld [vmem:[#allocation2 + $0x140] sm:$0xff]
      %v1142 = vld [vmem:[#allocation2 + $0x148] sm:$0xff]
      %v1143 = vld [vmem:[#allocation2 + $0x150] sm:$0xff]
      %v1144 = vld [vmem:[#allocation2 + $0x158] sm:$0xff]
      %v1145 = vld [vmem:[#allocation2 + $0x160] sm:$0xff]
      %v1146 = vld [vmem:[#allocation2 + $0x168] sm:$0xff]
      %v1147 = vld [vmem:[#allocation2 + $0x170] sm:$0xff]
      %v1148 = vld [vmem:[#allocation2 + $0x178] sm:$0xff]
      %v1149 = vld [vmem:[#allocation2 + $0x180] sm:$0xff]
      %v1150 = vld [vmem:[#allocation2 + $0x188] sm:$0xff]
      %v1151 = vld [vmem:[#allocation2 + $0x190] sm:$0xff]
      %v1152 = vld [vmem:[#allocation2 + $0x198] sm:$0xff]
      %v1153 = vld [vmem:[#allocation2 + $0x1a0] sm:$0xff]
      %v1154 = vld [vmem:[#allocation2 + $0x1a8] sm:$0xff]
      %v1155 = vld [vmem:[#allocation2 + $0x1b0] sm:$0xff]
      %v1156 = vld [vmem:[#allocation2 + $0x1b8] sm:$0xff]
      %v1157 = vld [vmem:[#allocation2 + $0x1c0] sm:$0xff]
      %v1158 = vld [vmem:[#allocation2 + $0x1c8] sm:$0xff]
      %v1159 = vld [vmem:[#allocation2 + $0x1d0] sm:$0xff]
      %v1160 = vld [vmem:[#allocation2 + $0x1d8] sm:$0xff]
      %v1161 = vld [vmem:[#allocation2 + $0x1e0] sm:$0xff]
      %v1162 = vld [vmem:[#allocation2 + $0x1e8] sm:$0xff]
      %v1163 = vld [vmem:[#allocation2 + $0x1f0] sm:$0xff]
      %v1164 = vld [vmem:[#allocation2 + $0x1f8] sm:$0xff]
      %v1165 = vsel %vm1033, %v1101, 0.0
      %v1166 = vsel %vm1033, %v1102, 0.0
      %v1167 = vadd.f32 %v1165, %v1166
      %v1168 = vsel %vm1033, %v1103, 0.0
      %v1169 = vadd.f32 %v1167, %v1168
      %v1170 = vsel %vm1033, %v1104, 0.0
      %v1171 = vadd.f32 %v1169, %v1170
      %v1172 = vsel %vm1033, %v1105, 0.0
      %v1173 = vadd.f32 %v1171, %v1172
      %v1174 = vsel %vm1033, %v1106, 0.0
      %v1175 = vadd.f32 %v1173, %v1174
      %v1176 = vsel %vm1033, %v1107, 0.0
      %v1177 = vadd.f32 %v1175, %v1176
      %v1178 = vsel %vm1033, %v1108, 0.0
      %v1179 = vadd.f32 %v1177, %v1178
      %v1180 = vsel %vm1033, %v1109, 0.0
      %v1181 = vadd.f32 %v1179, %v1180
      %v1182 = vsel %vm1033, %v1110, 0.0
      %v1183 = vadd.f32 %v1181, %v1182
      %v1184 = vsel %vm1033, %v1111, 0.0
      %v1185 = vadd.f32 %v1183, %v1184
      %v1186 = vsel %vm1033, %v1112, 0.0
      %v1187 = vadd.f32 %v1185, %v1186
      %v1188 = vsel %vm1033, %v1113, 0.0
      %v1189 = vadd.f32 %v1187, %v1188
      %v1190 = vsel %vm1033, %v1114, 0.0
      %v1191 = vadd.f32 %v1189, %v1190
      %v1192 = vsel %vm1033, %v1115, 0.0
      %v1193 = vadd.f32 %v1191, %v1192
      %v1194 = vsel %vm1033, %v1116, 0.0
      %v1195 = vadd.f32 %v1193, %v1194
      %v1196 = vsel %vm1033, %v1117, 0.0
      %v1197 = vadd.f32 %v1195, %v1196
      %v1198 = vsel %vm1033, %v1118, 0.0
      %v1199 = vadd.f32 %v1197, %v1198
      %v1200 = vsel %vm1033, %v1119, 0.0
      %v1201 = vadd.f32 %v1199, %v1200
      %v1202 = vsel %vm1033, %v1120, 0.0
      %v1203 = vadd.f32 %v1201, %v1202
      %v1204 = vsel %vm1033, %v1121, 0.0
      %v1205 = vadd.f32 %v1203, %v1204
      %v1206 = vsel %vm1033, %v1122, 0.0
      %v1207 = vadd.f32 %v1205, %v1206
      %v1208 = vsel %vm1033, %v1123, 0.0
      %v1209 = vadd.f32 %v1207, %v1208
      %v1210 = vsel %vm1033, %v1124, 0.0
      %v1211 = vadd.f32 %v1209, %v1210
      %v1212 = vsel %vm1033, %v1125, 0.0
      %v1213 = vadd.f32 %v1211, %v1212
      %v1214 = vsel %vm1033, %v1126, 0.0
      %v1215 = vadd.f32 %v1213, %v1214
      %v1216 = vsel %vm1033, %v1127, 0.0
      %v1217 = vadd.f32 %v1215, %v1216
      %v1218 = vsel %vm1033, %v1128, 0.0
      %v1219 = vadd.f32 %v1217, %v1218
      %v1220 = vsel %vm1033, %v1129, 0.0
      %v1221 = vadd.f32 %v1219, %v1220
      %v1222 = vsel %vm1033, %v1130, 0.0
      %v1223 = vadd.f32 %v1221, %v1222
      %v1224 = vsel %vm1033, %v1131, 0.0
      %v1225 = vadd.f32 %v1223, %v1224
      %v1226 = vsel %vm1033, %v1132, 0.0
      %v1227 = vadd.f32 %v1225, %v1226
      %v1228 = vsel %vm1033, %v1133, 0.0
      %v1229 = vadd.f32 %v1227, %v1228
      %v1230 = vsel %vm1033, %v1134, 0.0
      %v1231 = vadd.f32 %v1229, %v1230
      %v1232 = vsel %vm1033, %v1135, 0.0
      %v1233 = vadd.f32 %v1231, %v1232
      %v1234 = vsel %vm1033, %v1136, 0.0
      %v1235 = vadd.f32 %v1233, %v1234
      %v1236 = vsel %vm1033, %v1137, 0.0
      %v1237 = vadd.f32 %v1235, %v1236
      %v1238 = vsel %vm1033, %v1138, 0.0
      %v1239 = vadd.f32 %v1237, %v1238
      %v1240 = vsel %vm1033, %v1139, 0.0
      %v1241 = vadd.f32 %v1239, %v1240
      %v1242 = vsel %vm1033, %v1140, 0.0
      %v1243 = vadd.f32 %v1241, %v1242
      %v1244 = vsel %vm1033, %v1141, 0.0
      %v1245 = vadd.f32 %v1243, %v1244
      %v1246 = vsel %vm1033, %v1142, 0.0
      %v1247 = vadd.f32 %v1245, %v1246
      %v1248 = vsel %vm1033, %v1143, 0.0
      %v1249 = vadd.f32 %v1247, %v1248
      %v1250 = vsel %vm1033, %v1144, 0.0
      %v1251 = vadd.f32 %v1249, %v1250
      %v1252 = vsel %vm1033, %v1145, 0.0
      %v1253 = vadd.f32 %v1251, %v1252
      %v1254 = vsel %vm1033, %v1146, 0.0
      %v1255 = vadd.f32 %v1253, %v1254
      %v1256 = vsel %vm1033, %v1147, 0.0
      %v1257 = vadd.f32 %v1255, %v1256
      %v1258 = vsel %vm1033, %v1148, 0.0
      %v1259 = vadd.f32 %v1257, %v1258
      %v1260 = vsel %vm1033, %v1149, 0.0
      %v1261 = vadd.f32 %v1259, %v1260
      %v1262 = vsel %vm1033, %v1150, 0.0
      %v1263 = vadd.f32 %v1261, %v1262
      %v1264 = vsel %vm1033, %v1151, 0.0
      %v1265 = vadd.f32 %v1263, %v1264
      %v1266 = vsel %vm1033, %v1152, 0.0
      %v1267 = vadd.f32 %v1265, %v1266
      %v1268 = vsel %vm1033, %v1153, 0.0
      %v1269 = vadd.f32 %v1267, %v1268
      %v1270 = vsel %vm1033, %v1154, 0.0
      %v1271 = vadd.f32 %v1269, %v1270
      %v1272 = vsel %vm1033, %v1155, 0.0
      %v1273 = vadd.f32 %v1271, %v1272
      %v1274 = vsel %vm1033, %v1156, 0.0
      %v1275 = vadd.f32 %v1273, %v1274
      %v1276 = vsel %vm1033, %v1157, 0.0
      %v1277 = vadd.f32 %v1275, %v1276
      %v1278 = vsel %vm1033, %v1158, 0.0
      %v1279 = vadd.f32 %v1277, %v1278
      %v1280 = vsel %vm1033, %v1159, 0.0
      %v1281 = vadd.f32 %v1279, %v1280
      %v1282 = vsel %vm1033, %v1160, 0.0
      %v1283 = vadd.f32 %v1281, %v1282
      %v1284 = vsel %vm1033, %v1161, 0.0
      %v1285 = vadd.f32 %v1283, %v1284
      %v1286 = vsel %vm1033, %v1162, 0.0
      %v1287 = vadd.f32 %v1285, %v1286
      %v1288 = vsel %vm1033, %v1163, 0.0
      %v1289 = vadd.f32 %v1287, %v1288
      %v1290 = vsel %vm1033, %v1164, 0.0
      %v1291 = vadd.f32 %v1289, %v1290
      %v1292 = vrot.slane %v1291, 4
      %v1293 = vadd.f32 %v1291, %v1292
      %v1294 = vrot.slane %v1293, 2
      %v1295 = vadd.f32 %v1293, %v1294
      %v1296 = vrot.slane %v1295, 1
      %v1297 = vadd.f32 %v1295, %v1296
      %v1298 = vmul.f32 %v1297, 0.001953125
      %v1299 = vsub.f32 %v1101, %v1298
      %v1300 = vsub.f32 %v1102, %v1298
      %v1301 = vsub.f32 %v1103, %v1298
      %v1302 = vsub.f32 %v1104, %v1298
      %v1303 = vsub.f32 %v1105, %v1298
      %v1304 = vsub.f32 %v1106, %v1298
      %v1305 = vsub.f32 %v1107, %v1298
      %v1306 = vsub.f32 %v1108, %v1298
      %v1307 = vsub.f32 %v1109, %v1298
      %v1308 = vsub.f32 %v1110, %v1298
      %v1309 = vsub.f32 %v1111, %v1298
      %v1310 = vsub.f32 %v1112, %v1298
      %v1311 = vsub.f32 %v1113, %v1298
      %v1312 = vsub.f32 %v1114, %v1298
      %v1313 = vsub.f32 %v1115, %v1298
      %v1314 = vsub.f32 %v1116, %v1298
      %v1315 = vsub.f32 %v1117, %v1298
      %v1316 = vsub.f32 %v1118, %v1298
      %v1317 = vsub.f32 %v1119, %v1298
      %v1318 = vsub.f32 %v1120, %v1298
      %v1319 = vsub.f32 %v1121, %v1298
      %v1320 = vsub.f32 %v1122, %v1298
      %v1321 = vsub.f32 %v1123, %v1298
      %v1322 = vsub.f32 %v1124, %v1298
      %v1323 = vsub.f32 %v1125, %v1298
      %v1324 = vsub.f32 %v1126, %v1298
      %v1325 = vsub.f32 %v1127, %v1298
      %v1326 = vsub.f32 %v1128, %v1298
      %v1327 = vsub.f32 %v1129, %v1298
      %v1328 = vsub.f32 %v1130, %v1298
      %v1329 = vsub.f32 %v1131, %v1298
      %v1330 = vsub.f32 %v1132, %v1298
      %v1331 = vsub.f32 %v1133, %v1298
      %v1332 = vsub.f32 %v1134, %v1298
      %v1333 = vsub.f32 %v1135, %v1298
      %v1334 = vsub.f32 %v1136, %v1298
      %v1335 = vsub.f32 %v1137, %v1298
      %v1336 = vsub.f32 %v1138, %v1298
      %v1337 = vsub.f32 %v1139, %v1298
      %v1338 = vsub.f32 %v1140, %v1298
      %v1339 = vsub.f32 %v1141, %v1298
      %v1340 = vsub.f32 %v1142, %v1298
      %v1341 = vsub.f32 %v1143, %v1298
      %v1342 = vsub.f32 %v1144, %v1298
      %v1343 = vsub.f32 %v1145, %v1298
      %v1344 = vsub.f32 %v1146, %v1298
      %v1345 = vsub.f32 %v1147, %v1298
      %v1346 = vsub.f32 %v1148, %v1298
      %v1347 = vsub.f32 %v1149, %v1298
      %v1348 = vsub.f32 %v1150, %v1298
      %v1349 = vsub.f32 %v1151, %v1298
      %v1350 = vsub.f32 %v1152, %v1298
      %v1351 = vsub.f32 %v1153, %v1298
      %v1352 = vsub.f32 %v1154, %v1298
      %v1353 = vsub.f32 %v1155, %v1298
      %v1354 = vsub.f32 %v1156, %v1298
      %v1355 = vsub.f32 %v1157, %v1298
      %v1356 = vsub.f32 %v1158, %v1298
      %v1357 = vsub.f32 %v1159, %v1298
      %v1358 = vsub.f32 %v1160, %v1298
      %v1359 = vsub.f32 %v1161, %v1298
      %v1360 = vsub.f32 %v1162, %v1298
      %v1361 = vsub.f32 %v1163, %v1298
      %v1362 = vsub.f32 %v1164, %v1298
      %v1363 = vmul.f32 %v1299, %v1299
      %v1364 = vmul.f32 %v1300, %v1300
      %v1365 = vmul.f32 %v1301, %v1301
      %v1366 = vmul.f32 %v1302, %v1302
      %v1367 = vmul.f32 %v1303, %v1303
      %v1368 = vmul.f32 %v1304, %v1304
      %v1369 = vmul.f32 %v1305, %v1305
      %v1370 = vmul.f32 %v1306, %v1306
      %v1371 = vmul.f32 %v1307, %v1307
      %v1372 = vmul.f32 %v1308, %v1308
      %v1373 = vmul.f32 %v1309, %v1309
      %v1374 = vmul.f32 %v1310, %v1310
      %v1375 = vmul.f32 %v1311, %v1311
      %v1376 = vmul.f32 %v1312, %v1312
      %v1377 = vmul.f32 %v1313, %v1313
      %v1378 = vmul.f32 %v1314, %v1314
      %v1379 = vmul.f32 %v1315, %v1315
      %v1380 = vmul.f32 %v1316, %v1316
      %v1381 = vmul.f32 %v1317, %v1317
      %v1382 = vmul.f32 %v1318, %v1318
      %v1383 = vmul.f32 %v1319, %v1319
      %v1384 = vmul.f32 %v1320, %v1320
      %v1385 = vmul.f32 %v1321, %v1321
      %v1386 = vmul.f32 %v1322, %v1322
      %v1387 = vmul.f32 %v1323, %v1323
      %v1388 = vmul.f32 %v1324, %v1324
      %v1389 = vmul.f32 %v1325, %v1325
      %v1390 = vmul.f32 %v1326, %v1326
      %v1391 = vmul.f32 %v1327, %v1327
      %v1392 = vmul.f32 %v1328, %v1328
      %v1393 = vmul.f32 %v1329, %v1329
      %v1394 = vmul.f32 %v1330, %v1330
      %v1395 = vmul.f32 %v1331, %v1331
      %v1396 = vmul.f32 %v1332, %v1332
      %v1397 = vmul.f32 %v1333, %v1333
      %v1398 = vmul.f32 %v1334, %v1334
      %v1399 = vmul.f32 %v1335, %v1335
      %v1400 = vmul.f32 %v1336, %v1336
      %v1401 = vmul.f32 %v1337, %v1337
      %v1402 = vmul.f32 %v1338, %v1338
      %v1403 = vmul.f32 %v1339, %v1339
      %v1404 = vmul.f32 %v1340, %v1340
      %v1405 = vmul.f32 %v1341, %v1341
      %v1406 = vmul.f32 %v1342, %v1342
      %v1407 = vmul.f32 %v1343, %v1343
      %v1408 = vmul.f32 %v1344, %v1344
      %v1409 = vmul.f32 %v1345, %v1345
      %v1410 = vmul.f32 %v1346, %v1346
      %v1411 = vmul.f32 %v1347, %v1347
      %v1412 = vmul.f32 %v1348, %v1348
      %v1413 = vmul.f32 %v1349, %v1349
      %v1414 = vmul.f32 %v1350, %v1350
      %v1415 = vmul.f32 %v1351, %v1351
      %v1416 = vmul.f32 %v1352, %v1352
      %v1417 = vmul.f32 %v1353, %v1353
      %v1418 = vmul.f32 %v1354, %v1354
      %v1419 = vmul.f32 %v1355, %v1355
      %v1420 = vmul.f32 %v1356, %v1356
      %v1421 = vmul.f32 %v1357, %v1357
      %v1422 = vmul.f32 %v1358, %v1358
      %v1423 = vmul.f32 %v1359, %v1359
      %v1424 = vmul.f32 %v1360, %v1360
      %v1425 = vmul.f32 %v1361, %v1361
      %v1426 = vmul.f32 %v1362, %v1362
      %v1427 = vsel %vm1033, %v1363, 0.0
      %v1428 = vsel %vm1033, %v1364, 0.0
      %v1429 = vadd.f32 %v1427, %v1428
      %v1430 = vsel %vm1033, %v1365, 0.0
      %v1431 = vadd.f32 %v1429, %v1430
      %v1432 = vsel %vm1033, %v1366, 0.0
      %v1433 = vadd.f32 %v1431, %v1432
      %v1434 = vsel %vm1033, %v1367, 0.0
      %v1435 = vadd.f32 %v1433, %v1434
      %v1436 = vsel %vm1033, %v1368, 0.0
      %v1437 = vadd.f32 %v1435, %v1436
      %v1438 = vsel %vm1033, %v1369, 0.0
      %v1439 = vadd.f32 %v1437, %v1438
      %v1440 = vsel %vm1033, %v1370, 0.0
      %v1441 = vadd.f32 %v1439, %v1440
      %v1442 = vsel %vm1033, %v1371, 0.0
      %v1443 = vadd.f32 %v1441, %v1442
      %v1444 = vsel %vm1033, %v1372, 0.0
      %v1445 = vadd.f32 %v1443, %v1444
      %v1446 = vsel %vm1033, %v1373, 0.0
      %v1447 = vadd.f32 %v1445, %v1446
      %v1448 = vsel %vm1033, %v1374, 0.0
      %v1449 = vadd.f32 %v1447, %v1448
      %v1450 = vsel %vm1033, %v1375, 0.0
      %v1451 = vadd.f32 %v1449, %v1450
      %v1452 = vsel %vm1033, %v1376, 0.0
      %v1453 = vadd.f32 %v1451, %v1452
      %v1454 = vsel %vm1033, %v1377, 0.0
      %v1455 = vadd.f32 %v1453, %v1454
      %v1456 = vsel %vm1033, %v1378, 0.0
      %v1457 = vadd.f32 %v1455, %v1456
      %v1458 = vsel %vm1033, %v1379, 0.0
      %v1459 = vadd.f32 %v1457, %v1458
      %v1460 = vsel %vm1033, %v1380, 0.0
      %v1461 = vadd.f32 %v1459, %v1460
      %v1462 = vsel %vm1033, %v1381, 0.0
      %v1463 = vadd.f32 %v1461, %v1462
      %v1464 = vsel %vm1033, %v1382, 0.0
      %v1465 = vadd.f32 %v1463, %v1464
      %v1466 = vsel %vm1033, %v1383, 0.0
      %v1467 = vadd.f32 %v1465, %v1466
      %v1468 = vsel %vm1033, %v1384, 0.0
      %v1469 = vadd.f32 %v1467, %v1468
      %v1470 = vsel %vm1033, %v1385, 0.0
      %v1471 = vadd.f32 %v1469, %v1470
      %v1472 = vsel %vm1033, %v1386, 0.0
      %v1473 = vadd.f32 %v1471, %v1472
      %v1474 = vsel %vm1033, %v1387, 0.0
      %v1475 = vadd.f32 %v1473, %v1474
      %v1476 = vsel %vm1033, %v1388, 0.0
      %v1477 = vadd.f32 %v1475, %v1476
      %v1478 = vsel %vm1033, %v1389, 0.0
      %v1479 = vadd.f32 %v1477, %v1478
      %v1480 = vsel %vm1033, %v1390, 0.0
      %v1481 = vadd.f32 %v1479, %v1480
      %v1482 = vsel %vm1033, %v1391, 0.0
      %v1483 = vadd.f32 %v1481, %v1482
      %v1484 = vsel %vm1033, %v1392, 0.0
      %v1485 = vadd.f32 %v1483, %v1484
      %v1486 = vsel %vm1033, %v1393, 0.0
      %v1487 = vadd.f32 %v1485, %v1486
      %v1488 = vsel %vm1033, %v1394, 0.0
      %v1489 = vadd.f32 %v1487, %v1488
      %v1490 = vsel %vm1033, %v1395, 0.0
      %v1491 = vadd.f32 %v1489, %v1490
      %v1492 = vsel %vm1033, %v1396, 0.0
      %v1493 = vadd.f32 %v1491, %v1492
      %v1494 = vsel %vm1033, %v1397, 0.0
      %v1495 = vadd.f32 %v1493, %v1494
      %v1496 = vsel %vm1033, %v1398, 0.0
      %v1497 = vadd.f32 %v1495, %v1496
      %v1498 = vsel %vm1033, %v1399, 0.0
      %v1499 = vadd.f32 %v1497, %v1498
      %v1500 = vsel %vm1033, %v1400, 0.0
      %v1501 = vadd.f32 %v1499, %v1500
      %v1502 = vsel %vm1033, %v1401, 0.0
      %v1503 = vadd.f32 %v1501, %v1502
      %v1504 = vsel %vm1033, %v1402, 0.0
      %v1505 = vadd.f32 %v1503, %v1504
      %v1506 = vsel %vm1033, %v1403, 0.0
      %v1507 = vadd.f32 %v1505, %v1506
      %v1508 = vsel %vm1033, %v1404, 0.0
      %v1509 = vadd.f32 %v1507, %v1508
      %v1510 = vsel %vm1033, %v1405, 0.0
      %v1511 = vadd.f32 %v1509, %v1510
      %v1512 = vsel %vm1033, %v1406, 0.0
      %v1513 = vadd.f32 %v1511, %v1512
      %v1514 = vsel %vm1033, %v1407, 0.0
      %v1515 = vadd.f32 %v1513, %v1514
      %v1516 = vsel %vm1033, %v1408, 0.0
      %v1517 = vadd.f32 %v1515, %v1516
      %v1518 = vsel %vm1033, %v1409, 0.0
      %v1519 = vadd.f32 %v1517, %v1518
      %v1520 = vsel %vm1033, %v1410, 0.0
      %v1521 = vadd.f32 %v1519, %v1520
      %v1522 = vsel %vm1033, %v1411, 0.0
      %v1523 = vadd.f32 %v1521, %v1522
      %v1524 = vsel %vm1033, %v1412, 0.0
      %v1525 = vadd.f32 %v1523, %v1524
      %v1526 = vsel %vm1033, %v1413, 0.0
      %v1527 = vadd.f32 %v1525, %v1526
      %v1528 = vsel %vm1033, %v1414, 0.0
      %v1529 = vadd.f32 %v1527, %v1528
      %v1530 = vsel %vm1033, %v1415, 0.0
      %v1531 = vadd.f32 %v1529, %v1530
      %v1532 = vsel %vm1033, %v1416, 0.0
      %v1533 = vadd.f32 %v1531, %v1532
      %v1534 = vsel %vm1033, %v1417, 0.0
      %v1535 = vadd.f32 %v1533, %v1534
      %v1536 = vsel %vm1033, %v1418, 0.0
      %v1537 = vadd.f32 %v1535, %v1536
      %v1538 = vsel %vm1033, %v1419, 0.0
      %v1539 = vadd.f32 %v1537, %v1538
      %v1540 = vsel %vm1033, %v1420, 0.0
      %v1541 = vadd.f32 %v1539, %v1540
      %v1542 = vsel %vm1033, %v1421, 0.0
      %v1543 = vadd.f32 %v1541, %v1542
      %v1544 = vsel %vm1033, %v1422, 0.0
      %v1545 = vadd.f32 %v1543, %v1544
      %v1546 = vsel %vm1033, %v1423, 0.0
      %v1547 = vadd.f32 %v1545, %v1546
      %v1548 = vsel %vm1033, %v1424, 0.0
      %v1549 = vadd.f32 %v1547, %v1548
      %v1550 = vsel %vm1033, %v1425, 0.0
      %v1551 = vadd.f32 %v1549, %v1550
      %v1552 = vsel %vm1033, %v1426, 0.0
      %v1553 = vadd.f32 %v1551, %v1552
      %v1554 = vrot.slane %v1553, 4
      %v1555 = vadd.f32 %v1553, %v1554
      %v1556 = vrot.slane %v1555, 2
      %v1557 = vadd.f32 %v1555, %v1556
      %v1558 = vrot.slane %v1557, 1
      %v1559 = vadd.f32 %v1557, %v1558
      %v1560 = vmul.f32 %v1559, 0.001953125
      %v1561 = vld [vmem:[%s2] sm:$0x1]
      %v1562 = vadd.f32 %v1560, 1e-05
      %v1563 = vrsqrt.pop %v1562
      %v1564 = vmul.f32 %v1561, %v1563
      %v1566 = vlaneseq
      %v1567 = vshrl.u32 %v1566, 7
      %v1568 = vsub.s32 0, %v1567
      %v1569 = vrot.slane %v1564, %v1568
      %v1571 = vmul.f32 %v1299, %v1569
      %v1572 = vmul.f32 %v1300, %v1569
      %v1573 = vmul.f32 %v1301, %v1569
      %v1574 = vmul.f32 %v1302, %v1569
      %v1575 = vmul.f32 %v1303, %v1569
      %v1576 = vmul.f32 %v1304, %v1569
      %v1577 = vmul.f32 %v1305, %v1569
      %v1578 = vmul.f32 %v1306, %v1569
      %v1579 = vmul.f32 %v1307, %v1569
      %v1580 = vmul.f32 %v1308, %v1569
      %v1581 = vmul.f32 %v1309, %v1569
      %v1582 = vmul.f32 %v1310, %v1569
      %v1583 = vmul.f32 %v1311, %v1569
      %v1584 = vmul.f32 %v1312, %v1569
      %v1585 = vmul.f32 %v1313, %v1569
      %v1586 = vmul.f32 %v1314, %v1569
      %v1587 = vmul.f32 %v1315, %v1569
      %v1588 = vmul.f32 %v1316, %v1569
      %v1589 = vmul.f32 %v1317, %v1569
      %v1590 = vmul.f32 %v1318, %v1569
      %v1591 = vmul.f32 %v1319, %v1569
      %v1592 = vmul.f32 %v1320, %v1569
      %v1593 = vmul.f32 %v1321, %v1569
      %v1594 = vmul.f32 %v1322, %v1569
      %v1595 = vmul.f32 %v1323, %v1569
      %v1596 = vmul.f32 %v1324, %v1569
      %v1597 = vmul.f32 %v1325, %v1569
      %v1598 = vmul.f32 %v1326, %v1569
      %v1599 = vmul.f32 %v1327, %v1569
      %v1600 = vmul.f32 %v1328, %v1569
      %v1601 = vmul.f32 %v1329, %v1569
      %v1602 = vmul.f32 %v1330, %v1569
      %v1603 = vmul.f32 %v1331, %v1569
      %v1604 = vmul.f32 %v1332, %v1569
      %v1605 = vmul.f32 %v1333, %v1569
      %v1606 = vmul.f32 %v1334, %v1569
      %v1607 = vmul.f32 %v1335, %v1569
      %v1608 = vmul.f32 %v1336, %v1569
      %v1609 = vmul.f32 %v1337, %v1569
      %v1610 = vmul.f32 %v1338, %v1569
      %v1611 = vmul.f32 %v1339, %v1569
      %v1612 = vmul.f32 %v1340, %v1569
      %v1613 = vmul.f32 %v1341, %v1569
      %v1614 = vmul.f32 %v1342, %v1569
      %v1615 = vmul.f32 %v1343, %v1569
      %v1616 = vmul.f32 %v1344, %v1569
      %v1617 = vmul.f32 %v1345, %v1569
      %v1618 = vmul.f32 %v1346, %v1569
      %v1619 = vmul.f32 %v1347, %v1569
      %v1620 = vmul.f32 %v1348, %v1569
      %v1621 = vmul.f32 %v1349, %v1569
      %v1622 = vmul.f32 %v1350, %v1569
      %v1623 = vmul.f32 %v1351, %v1569
      %v1624 = vmul.f32 %v1352, %v1569
      %v1625 = vmul.f32 %v1353, %v1569
      %v1626 = vmul.f32 %v1354, %v1569
      %v1627 = vmul.f32 %v1355, %v1569
      %v1628 = vmul.f32 %v1356, %v1569
      %v1629 = vmul.f32 %v1357, %v1569
      %v1630 = vmul.f32 %v1358, %v1569
      %v1631 = vmul.f32 %v1359, %v1569
      %v1632 = vmul.f32 %v1360, %v1569
      %v1633 = vmul.f32 %v1361, %v1569
      %v1634 = vmul.f32 %v1362, %v1569
      %v1635 = vld [vmem:[%s3] sm:$0x1]
      %v1637 = vlaneseq
      %v1638 = vshrl.u32 %v1637, 7
      %v1639 = vsub.s32 0, %v1638
      %v1640 = vrot.slane %v1635, %v1639
      %v1642 = vadd.f32 %v1571, %v1640
      %v1643 = vadd.f32 %v1572, %v1640
      %v1644 = vadd.f32 %v1573, %v1640
      %v1645 = vadd.f32 %v1574, %v1640
      %v1646 = vadd.f32 %v1575, %v1640
      %v1647 = vadd.f32 %v1576, %v1640
      %v1648 = vadd.f32 %v1577, %v1640
      %v1649 = vadd.f32 %v1578, %v1640
      %v1650 = vadd.f32 %v1579, %v1640
      %v1651 = vadd.f32 %v1580, %v1640
      %v1652 = vadd.f32 %v1581, %v1640
      %v1653 = vadd.f32 %v1582, %v1640
      %v1654 = vadd.f32 %v1583, %v1640
      %v1655 = vadd.f32 %v1584, %v1640
      %v1656 = vadd.f32 %v1585, %v1640
      %v1657 = vadd.f32 %v1586, %v1640
      %v1658 = vadd.f32 %v1587, %v1640
      %v1659 = vadd.f32 %v1588, %v1640
      %v1660 = vadd.f32 %v1589, %v1640
      %v1661 = vadd.f32 %v1590, %v1640
      %v1662 = vadd.f32 %v1591, %v1640
      %v1663 = vadd.f32 %v1592, %v1640
      %v1664 = vadd.f32 %v1593, %v1640
      %v1665 = vadd.f32 %v1594, %v1640
      %v1666 = vadd.f32 %v1595, %v1640
      %v1667 = vadd.f32 %v1596, %v1640
      %v1668 = vadd.f32 %v1597, %v1640
      %v1669 = vadd.f32 %v1598, %v1640
      %v1670 = vadd.f32 %v1599, %v1640
      %v1671 = vadd.f32 %v1600, %v1640
      %v1672 = vadd.f32 %v1601, %v1640
      %v1673 = vadd.f32 %v1602, %v1640
      %v1674 = vadd.f32 %v1603, %v1640
      %v1675 = vadd.f32 %v1604, %v1640
      %v1676 = vadd.f32 %v1605, %v1640
      %v1677 = vadd.f32 %v1606, %v1640
      %v1678 = vadd.f32 %v1607, %v1640
      %v1679 = vadd.f32 %v1608, %v1640
      %v1680 = vadd.f32 %v1609, %v1640
      %v1681 = vadd.f32 %v1610, %v1640
      %v1682 = vadd.f32 %v1611, %v1640
      %v1683 = vadd.f32 %v1612, %v1640
      %v1684 = vadd.f32 %v1613, %v1640
      %v1685 = vadd.f32 %v1614, %v1640
      %v1686 = vadd.f32 %v1615, %v1640
      %v1687 = vadd.f32 %v1616, %v1640
      %v1688 = vadd.f32 %v1617, %v1640
      %v1689 = vadd.f32 %v1618, %v1640
      %v1690 = vadd.f32 %v1619, %v1640
      %v1691 = vadd.f32 %v1620, %v1640
      %v1692 = vadd.f32 %v1621, %v1640
      %v1693 = vadd.f32 %v1622, %v1640
      %v1694 = vadd.f32 %v1623, %v1640
      %v1695 = vadd.f32 %v1624, %v1640
      %v1696 = vadd.f32 %v1625, %v1640
      %v1697 = vadd.f32 %v1626, %v1640
      %v1698 = vadd.f32 %v1627, %v1640
      %v1699 = vadd.f32 %v1628, %v1640
      %v1700 = vadd.f32 %v1629, %v1640
      %v1701 = vadd.f32 %v1630, %v1640
      %v1702 = vadd.f32 %v1631, %v1640
      %v1703 = vadd.f32 %v1632, %v1640
      %v1704 = vadd.f32 %v1633, %v1640
      %v1705 = vadd.f32 %v1634, %v1640
      %v1706 = vld [vmem:[%s4] sm:$0x1]
      %vm1707 = vcmp.gt.f32.partialorder %v1706, 0.5
      %v1708 = vmax.f32 %v1642, 0.0
      %v1709 = vmax.f32 %v1643, 0.0
      %v1710 = vmax.f32 %v1644, 0.0
      %v1711 = vmax.f32 %v1645, 0.0
      %v1712 = vmax.f32 %v1646, 0.0
      %v1713 = vmax.f32 %v1647, 0.0
      %v1714 = vmax.f32 %v1648, 0.0
      %v1715 = vmax.f32 %v1649, 0.0
      %v1716 = vmax.f32 %v1650, 0.0
      %v1717 = vmax.f32 %v1651, 0.0
      %v1718 = vmax.f32 %v1652, 0.0
      %v1719 = vmax.f32 %v1653, 0.0
      %v1720 = vmax.f32 %v1654, 0.0
      %v1721 = vmax.f32 %v1655, 0.0
      %v1722 = vmax.f32 %v1656, 0.0
      %v1723 = vmax.f32 %v1657, 0.0
      %v1724 = vmax.f32 %v1658, 0.0
      %v1725 = vmax.f32 %v1659, 0.0
      %v1726 = vmax.f32 %v1660, 0.0
      %v1727 = vmax.f32 %v1661, 0.0
      %v1728 = vmax.f32 %v1662, 0.0
      %v1729 = vmax.f32 %v1663, 0.0
      %v1730 = vmax.f32 %v1664, 0.0
      %v1731 = vmax.f32 %v1665, 0.0
      %v1732 = vmax.f32 %v1666, 0.0
      %v1733 = vmax.f32 %v1667, 0.0
      %v1734 = vmax.f32 %v1668, 0.0
      %v1735 = vmax.f32 %v1669, 0.0
      %v1736 = vmax.f32 %v1670, 0.0
      %v1737 = vmax.f32 %v1671, 0.0
      %v1738 = vmax.f32 %v1672, 0.0
      %v1739 = vmax.f32 %v1673, 0.0
      %v1740 = vmax.f32 %v1674, 0.0
      %v1741 = vmax.f32 %v1675, 0.0
      %v1742 = vmax.f32 %v1676, 0.0
      %v1743 = vmax.f32 %v1677, 0.0
      %v1744 = vmax.f32 %v1678, 0.0
      %v1745 = vmax.f32 %v1679, 0.0
      %v1746 = vmax.f32 %v1680, 0.0
      %v1747 = vmax.f32 %v1681, 0.0
      %v1748 = vmax.f32 %v1682, 0.0
      %v1749 = vmax.f32 %v1683, 0.0
      %v1750 = vmax.f32 %v1684, 0.0
      %v1751 = vmax.f32 %v1685, 0.0
      %v1752 = vmax.f32 %v1686, 0.0
      %v1753 = vmax.f32 %v1687, 0.0
      %v1754 = vmax.f32 %v1688, 0.0
      %v1755 = vmax.f32 %v1689, 0.0
      %v1756 = vmax.f32 %v1690, 0.0
      %v1757 = vmax.f32 %v1691, 0.0
      %v1758 = vmax.f32 %v1692, 0.0
      %v1759 = vmax.f32 %v1693, 0.0
      %v1760 = vmax.f32 %v1694, 0.0
      %v1761 = vmax.f32 %v1695, 0.0
      %v1762 = vmax.f32 %v1696, 0.0
      %v1763 = vmax.f32 %v1697, 0.0
      %v1764 = vmax.f32 %v1698, 0.0
      %v1765 = vmax.f32 %v1699, 0.0
      %v1766 = vmax.f32 %v1700, 0.0
      %v1767 = vmax.f32 %v1701, 0.0
      %v1768 = vmax.f32 %v1702, 0.0
      %v1769 = vmax.f32 %v1703, 0.0
      %v1770 = vmax.f32 %v1704, 0.0
      %v1771 = vmax.f32 %v1705, 0.0
      %v1772 = vsel %vm1707, 1, 0
      %v1773 = vlaneseq
      %v1774 = vshrl.u32 %v1773, 7
      %v1775 = vsub.s32 0, %v1774
      %v1776 = vrot.slane %v1772, %v1775
      %vm1777 = vcmp.eq.s32.totalorder %v1776, 1
      %v1778 = vsel %vm1777, %v1708, %v1642
      %v1779 = vsel %vm1777, %v1709, %v1643
      %v1780 = vsel %vm1777, %v1710, %v1644
      %v1781 = vsel %vm1777, %v1711, %v1645
      %v1782 = vsel %vm1777, %v1712, %v1646
      %v1783 = vsel %vm1777, %v1713, %v1647
      %v1784 = vsel %vm1777, %v1714, %v1648
      %v1785 = vsel %vm1777, %v1715, %v1649
      %v1786 = vsel %vm1777, %v1716, %v1650
      %v1787 = vsel %vm1777, %v1717, %v1651
      %v1788 = vsel %vm1777, %v1718, %v1652
      %v1789 = vsel %vm1777, %v1719, %v1653
      %v1790 = vsel %vm1777, %v1720, %v1654
      %v1791 = vsel %vm1777, %v1721, %v1655
      %v1792 = vsel %vm1777, %v1722, %v1656
      %v1793 = vsel %vm1777, %v1723, %v1657
      %v1794 = vsel %vm1777, %v1724, %v1658
      %v1795 = vsel %vm1777, %v1725, %v1659
      %v1796 = vsel %vm1777, %v1726, %v1660
      %v1797 = vsel %vm1777, %v1727, %v1661
      %v1798 = vsel %vm1777, %v1728, %v1662
      %v1799 = vsel %vm1777, %v1729, %v1663
      %v1800 = vsel %vm1777, %v1730, %v1664
      %v1801 = vsel %vm1777, %v1731, %v1665
      %v1802 = vsel %vm1777, %v1732, %v1666
      %v1803 = vsel %vm1777, %v1733, %v1667
      %v1804 = vsel %vm1777, %v1734, %v1668
      %v1805 = vsel %vm1777, %v1735, %v1669
      %v1806 = vsel %vm1777, %v1736, %v1670
      %v1807 = vsel %vm1777, %v1737, %v1671
      %v1808 = vsel %vm1777, %v1738, %v1672
      %v1809 = vsel %vm1777, %v1739, %v1673
      %v1810 = vsel %vm1777, %v1740, %v1674
      %v1811 = vsel %vm1777, %v1741, %v1675
      %v1812 = vsel %vm1777, %v1742, %v1676
      %v1813 = vsel %vm1777, %v1743, %v1677
      %v1814 = vsel %vm1777, %v1744, %v1678
      %v1815 = vsel %vm1777, %v1745, %v1679
      %v1816 = vsel %vm1777, %v1746, %v1680
      %v1817 = vsel %vm1777, %v1747, %v1681
      %v1818 = vsel %vm1777, %v1748, %v1682
      %v1819 = vsel %vm1777, %v1749, %v1683
      %v1820 = vsel %vm1777, %v1750, %v1684
      %v1821 = vsel %vm1777, %v1751, %v1685
      %v1822 = vsel %vm1777, %v1752, %v1686
      %v1823 = vsel %vm1777, %v1753, %v1687
      %v1824 = vsel %vm1777, %v1754, %v1688
      %v1825 = vsel %vm1777, %v1755, %v1689
      %v1826 = vsel %vm1777, %v1756, %v1690
      %v1827 = vsel %vm1777, %v1757, %v1691
      %v1828 = vsel %vm1777, %v1758, %v1692
      %v1829 = vsel %vm1777, %v1759, %v1693
      %v1830 = vsel %vm1777, %v1760, %v1694
      %v1831 = vsel %vm1777, %v1761, %v1695
      %v1832 = vsel %vm1777, %v1762, %v1696
      %v1833 = vsel %vm1777, %v1763, %v1697
      %v1834 = vsel %vm1777, %v1764, %v1698
      %v1835 = vsel %vm1777, %v1765, %v1699
      %v1836 = vsel %vm1777, %v1766, %v1700
      %v1837 = vsel %vm1777, %v1767, %v1701
      %v1838 = vsel %vm1777, %v1768, %v1702
      %v1839 = vsel %vm1777, %v1769, %v1703
      %v1840 = vsel %vm1777, %v1770, %v1704
      %v1841 = vsel %vm1777, %v1771, %v1705
      %v1842 = vpack.c.bf16 %v1779, %v1778
      %v1843 = vpack.c.bf16 %v1781, %v1780
      %v1844 = vpack.c.bf16 %v1783, %v1782
      %v1845 = vpack.c.bf16 %v1785, %v1784
      %v1846 = vpack.c.bf16 %v1787, %v1786
      %v1847 = vpack.c.bf16 %v1789, %v1788
      %v1848 = vpack.c.bf16 %v1791, %v1790
      %v1849 = vpack.c.bf16 %v1793, %v1792
      %v1850 = vpack.c.bf16 %v1795, %v1794
      %v1851 = vpack.c.bf16 %v1797, %v1796
      %v1852 = vpack.c.bf16 %v1799, %v1798
      %v1853 = vpack.c.bf16 %v1801, %v1800
      %v1854 = vpack.c.bf16 %v1803, %v1802
      %v1855 = vpack.c.bf16 %v1805, %v1804
      %v1856 = vpack.c.bf16 %v1807, %v1806
      %v1857 = vpack.c.bf16 %v1809, %v1808
      %v1858 = vpack.c.bf16 %v1811, %v1810
      %v1859 = vpack.c.bf16 %v1813, %v1812
      %v1860 = vpack.c.bf16 %v1815, %v1814
      %v1861 = vpack.c.bf16 %v1817, %v1816
      %v1862 = vpack.c.bf16 %v1819, %v1818
      %v1863 = vpack.c.bf16 %v1821, %v1820
      %v1864 = vpack.c.bf16 %v1823, %v1822
      %v1865 = vpack.c.bf16 %v1825, %v1824
      %v1866 = vpack.c.bf16 %v1827, %v1826
      %v1867 = vpack.c.bf16 %v1829, %v1828
      %v1868 = vpack.c.bf16 %v1831, %v1830
      %v1869 = vpack.c.bf16 %v1833, %v1832
      %v1870 = vpack.c.bf16 %v1835, %v1834
      %v1871 = vpack.c.bf16 %v1837, %v1836
      %v1872 = vpack.c.bf16 %v1839, %v1838
      %v1873 = vpack.c.bf16 %v1841, %v1840
      %v1906 = vunpack.c.l.b16 %v1842
      %v1907 = vunpack.c.h.b16 %v1842
      %v1908 = vunpack.c.l.b16 %v1843
      %v1909 = vunpack.c.h.b16 %v1843
      %v1910 = vunpack.c.l.b16 %v1844
      %v1911 = vunpack.c.h.b16 %v1844
      %v1912 = vunpack.c.l.b16 %v1845
      %v1913 = vunpack.c.h.b16 %v1845
      %v1914 = vunpack.c.l.b16 %v1846
      %v1915 = vunpack.c.h.b16 %v1846
      %v1916 = vunpack.c.l.b16 %v1847
      %v1917 = vunpack.c.h.b16 %v1847
      %v1918 = vunpack.c.l.b16 %v1848
      %v1919 = vunpack.c.h.b16 %v1848
      %v1920 = vunpack.c.l.b16 %v1849
      %v1921 = vunpack.c.h.b16 %v1849
      %v1922 = vunpack.c.l.b16 %v1850
      %v1923 = vunpack.c.h.b16 %v1850
      %v1924 = vunpack.c.l.b16 %v1851
      %v1925 = vunpack.c.h.b16 %v1851
      %v1926 = vunpack.c.l.b16 %v1852
      %v1927 = vunpack.c.h.b16 %v1852
      %v1928 = vunpack.c.l.b16 %v1853
      %v1929 = vunpack.c.h.b16 %v1853
      %v1930 = vunpack.c.l.b16 %v1854
      %v1931 = vunpack.c.h.b16 %v1854
      %v1932 = vunpack.c.l.b16 %v1855
      %v1933 = vunpack.c.h.b16 %v1855
      %v1934 = vunpack.c.l.b16 %v1856
      %v1935 = vunpack.c.h.b16 %v1856
      %v1936 = vunpack.c.l.b16 %v1857
      %v1937 = vunpack.c.h.b16 %v1857
      %v1938 = vunpack.c.l.b16 %v1858
      %v1939 = vunpack.c.h.b16 %v1858
      %v1940 = vunpack.c.l.b16 %v1859
      %v1941 = vunpack.c.h.b16 %v1859
      %v1942 = vunpack.c.l.b16 %v1860
      %v1943 = vunpack.c.h.b16 %v1860
      %v1944 = vunpack.c.l.b16 %v1861
      %v1945 = vunpack.c.h.b16 %v1861
      %v1946 = vunpack.c.l.b16 %v1862
      %v1947 = vunpack.c.h.b16 %v1862
      %v1948 = vunpack.c.l.b16 %v1863
      %v1949 = vunpack.c.h.b16 %v1863
      %v1950 = vunpack.c.l.b16 %v1864
      %v1951 = vunpack.c.h.b16 %v1864
      %v1952 = vunpack.c.l.b16 %v1865
      %v1953 = vunpack.c.h.b16 %v1865
      %v1954 = vunpack.c.l.b16 %v1866
      %v1955 = vunpack.c.h.b16 %v1866
      %v1956 = vunpack.c.l.b16 %v1867
      %v1957 = vunpack.c.h.b16 %v1867
      %v1958 = vunpack.c.l.b16 %v1868
      %v1959 = vunpack.c.h.b16 %v1868
      %v1960 = vunpack.c.l.b16 %v1869
      %v1961 = vunpack.c.h.b16 %v1869
      %v1962 = vunpack.c.l.b16 %v1870
      %v1963 = vunpack.c.h.b16 %v1870
      %v1964 = vunpack.c.l.b16 %v1871
      %v1965 = vunpack.c.h.b16 %v1871
      %v1966 = vunpack.c.l.b16 %v1872
      %v1967 = vunpack.c.h.b16 %v1872
      %v1968 = vunpack.c.l.b16 %v1873
      %v1969 = vunpack.c.h.b16 %v1873
      %v1970 = vpack.c.b16 %v1906, %v1906
      %v1971 = vpack.c.b16 %v1907, %v1907
      %v1972 = vpack.c.b16 %v1908, %v1908
      %v1973 = vpack.c.b16 %v1909, %v1909
      %v1974 = vpack.c.b16 %v1910, %v1910
      %v1975 = vpack.c.b16 %v1911, %v1911
      %v1976 = vpack.c.b16 %v1912, %v1912
      %v1977 = vpack.c.b16 %v1913, %v1913
      %v1978 = vpack.c.b16 %v1914, %v1914
      %v1979 = vpack.c.b16 %v1915, %v1915
      %v1980 = vpack.c.b16 %v1916, %v1916
      %v1981 = vpack.c.b16 %v1917, %v1917
      %v1982 = vpack.c.b16 %v1918, %v1918
      %v1983 = vpack.c.b16 %v1919, %v1919
      %v1984 = vpack.c.b16 %v1920, %v1920
      %v1985 = vpack.c.b16 %v1921, %v1921
      %v1986 = vpack.c.b16 %v1922, %v1922
      %v1987 = vpack.c.b16 %v1923, %v1923
      %v1988 = vpack.c.b16 %v1924, %v1924
      %v1989 = vpack.c.b16 %v1925, %v1925
      %v1990 = vpack.c.b16 %v1926, %v1926
      %v1991 = vpack.c.b16 %v1927, %v1927
      %v1992 = vpack.c.b16 %v1928, %v1928
      %v1993 = vpack.c.b16 %v1929, %v1929
      %v1994 = vpack.c.b16 %v1930, %v1930
      %v1995 = vpack.c.b16 %v1931, %v1931
      %v1996 = vpack.c.b16 %v1932, %v1932
      %v1997 = vpack.c.b16 %v1933, %v1933
      %v1998 = vpack.c.b16 %v1934, %v1934
      %v1999 = vpack.c.b16 %v1935, %v1935
      %v2000 = vpack.c.b16 %v1936, %v1936
      %v2001 = vpack.c.b16 %v1937, %v1937
      %v2002 = vpack.c.b16 %v1938, %v1938
      %v2003 = vpack.c.b16 %v1939, %v1939
      %v2004 = vpack.c.b16 %v1940, %v1940
      %v2005 = vpack.c.b16 %v1941, %v1941
      %v2006 = vpack.c.b16 %v1942, %v1942
      %v2007 = vpack.c.b16 %v1943, %v1943
      %v2008 = vpack.c.b16 %v1944, %v1944
      %v2009 = vpack.c.b16 %v1945, %v1945
      %v2010 = vpack.c.b16 %v1946, %v1946
      %v2011 = vpack.c.b16 %v1947, %v1947
      %v2012 = vpack.c.b16 %v1948, %v1948
      %v2013 = vpack.c.b16 %v1949, %v1949
      %v2014 = vpack.c.b16 %v1950, %v1950
      %v2015 = vpack.c.b16 %v1951, %v1951
      %v2016 = vpack.c.b16 %v1952, %v1952
      %v2017 = vpack.c.b16 %v1953, %v1953
      %v2018 = vpack.c.b16 %v1954, %v1954
      %v2019 = vpack.c.b16 %v1955, %v1955
      %v2020 = vpack.c.b16 %v1956, %v1956
      %v2021 = vpack.c.b16 %v1957, %v1957
      %v2022 = vpack.c.b16 %v1958, %v1958
      %v2023 = vpack.c.b16 %v1959, %v1959
      %v2024 = vpack.c.b16 %v1960, %v1960
      %v2025 = vpack.c.b16 %v1961, %v1961
      %v2026 = vpack.c.b16 %v1962, %v1962
      %v2027 = vpack.c.b16 %v1963, %v1963
      %v2028 = vpack.c.b16 %v1964, %v1964
      %v2029 = vpack.c.b16 %v1965, %v1965
      %v2030 = vpack.c.b16 %v1966, %v1966
      %v2031 = vpack.c.b16 %v1967, %v1967
      %v2032 = vpack.c.b16 %v1968, %v1968
      %v2033 = vpack.c.b16 %v1969, %v1969
      %vm2098 = vcmask 519168
      %2099 = vst.msk [vmem:[%s5] sm:$0xf] %vm2098, %v1970
      %2100 = vst.msk [vmem:[%s5 + $0x4] sm:$0xf] %vm2098, %v1971
      %2101 = vst.msk [vmem:[%s5 + $0x8] sm:$0xf] %vm2098, %v1972
      %2102 = vst.msk [vmem:[%s5 + $0xc] sm:$0xf] %vm2098, %v1973
      %2103 = vst.msk [vmem:[%s5 + $0x10] sm:$0xf] %vm2098, %v1974
      %2104 = vst.msk [vmem:[%s5 + $0x14] sm:$0xf] %vm2098, %v1975
      %2105 = vst.msk [vmem:[%s5 + $0x18] sm:$0xf] %vm2098, %v1976
      %2106 = vst.msk [vmem:[%s5 + $0x1c] sm:$0xf] %vm2098, %v1977
      %2107 = vst.msk [vmem:[%s5 + $0x20] sm:$0xf] %vm2098, %v1978
      %2108 = vst.msk [vmem:[%s5 + $0x24] sm:$0xf] %vm2098, %v1979
      %2109 = vst.msk [vmem:[%s5 + $0x28] sm:$0xf] %vm2098, %v1980
      %2110 = vst.msk [vmem:[%s5 + $0x2c] sm:$0xf] %vm2098, %v1981
      %2111 = vst.msk [vmem:[%s5 + $0x30] sm:$0xf] %vm2098, %v1982
      %2112 = vst.msk [vmem:[%s5 + $0x34] sm:$0xf] %vm2098, %v1983
      %2113 = vst.msk [vmem:[%s5 + $0x38] sm:$0xf] %vm2098, %v1984
      %2114 = vst.msk [vmem:[%s5 + $0x3c] sm:$0xf] %vm2098, %v1985
      %2115 = vst.msk [vmem:[%s5 + $0x40] sm:$0xf] %vm2098, %v1986
      %2116 = vst.msk [vmem:[%s5 + $0x44] sm:$0xf] %vm2098, %v1987
      %2117 = vst.msk [vmem:[%s5 + $0x48] sm:$0xf] %vm2098, %v1988
      %2118 = vst.msk [vmem:[%s5 + $0x4c] sm:$0xf] %vm2098, %v1989
      %2119 = vst.msk [vmem:[%s5 + $0x50] sm:$0xf] %vm2098, %v1990
      %2120 = vst.msk [vmem:[%s5 + $0x54] sm:$0xf] %vm2098, %v1991
      %2121 = vst.msk [vmem:[%s5 + $0x58] sm:$0xf] %vm2098, %v1992
      %2122 = vst.msk [vmem:[%s5 + $0x5c] sm:$0xf] %vm2098, %v1993
      %2123 = vst.msk [vmem:[%s5 + $0x60] sm:$0xf] %vm2098, %v1994
      %2124 = vst.msk [vmem:[%s5 + $0x64] sm:$0xf] %vm2098, %v1995
      %2125 = vst.msk [vmem:[%s5 + $0x68] sm:$0xf] %vm2098, %v1996
      %2126 = vst.msk [vmem:[%s5 + $0x6c] sm:$0xf] %vm2098, %v1997
      %2127 = vst.msk [vmem:[%s5 + $0x70] sm:$0xf] %vm2098, %v1998
      %2128 = vst.msk [vmem:[%s5 + $0x74] sm:$0xf] %vm2098, %v1999
      %2129 = vst.msk [vmem:[%s5 + $0x78] sm:$0xf] %vm2098, %v2000
      %2130 = vst.msk [vmem:[%s5 + $0x7c] sm:$0xf] %vm2098, %v2001
      %2131 = vst.msk [vmem:[%s5 + $0x80] sm:$0xf] %vm2098, %v2002
      %2132 = vst.msk [vmem:[%s5 + $0x84] sm:$0xf] %vm2098, %v2003
      %2133 = vst.msk [vmem:[%s5 + $0x88] sm:$0xf] %vm2098, %v2004
      %2134 = vst.msk [vmem:[%s5 + $0x8c] sm:$0xf] %vm2098, %v2005
      %2135 = vst.msk [vmem:[%s5 + $0x90] sm:$0xf] %vm2098, %v2006
      %2136 = vst.msk [vmem:[%s5 + $0x94] sm:$0xf] %vm2098, %v2007
      %2137 = vst.msk [vmem:[%s5 + $0x98] sm:$0xf] %vm2098, %v2008
      %2138 = vst.msk [vmem:[%s5 + $0x9c] sm:$0xf] %vm2098, %v2009
      %2139 = vst.msk [vmem:[%s5 + $0xa0] sm:$0xf] %vm2098, %v2010
      %2140 = vst.msk [vmem:[%s5 + $0xa4] sm:$0xf] %vm2098, %v2011
      %2141 = vst.msk [vmem:[%s5 + $0xa8] sm:$0xf] %vm2098, %v2012
      %2142 = vst.msk [vmem:[%s5 + $0xac] sm:$0xf] %vm2098, %v2013
      %2143 = vst.msk [vmem:[%s5 + $0xb0] sm:$0xf] %vm2098, %v2014
      %2144 = vst.msk [vmem:[%s5 + $0xb4] sm:$0xf] %vm2098, %v2015
      %2145 = vst.msk [vmem:[%s5 + $0xb8] sm:$0xf] %vm2098, %v2016
      %2146 = vst.msk [vmem:[%s5 + $0xbc] sm:$0xf] %vm2098, %v2017
      %2147 = vst.msk [vmem:[%s5 + $0xc0] sm:$0xf] %vm2098, %v2018
      %2148 = vst.msk [vmem:[%s5 + $0xc4] sm:$0xf] %vm2098, %v2019
      %2149 = vst.msk [vmem:[%s5 + $0xc8] sm:$0xf] %vm2098, %v2020
      %2150 = vst.msk [vmem:[%s5 + $0xcc] sm:$0xf] %vm2098, %v2021
      %2151 = vst.msk [vmem:[%s5 + $0xd0] sm:$0xf] %vm2098, %v2022
      %2152 = vst.msk [vmem:[%s5 + $0xd4] sm:$0xf] %vm2098, %v2023
      %2153 = vst.msk [vmem:[%s5 + $0xd8] sm:$0xf] %vm2098, %v2024
      %2154 = vst.msk [vmem:[%s5 + $0xdc] sm:$0xf] %vm2098, %v2025
      %2155 = vst.msk [vmem:[%s5 + $0xe0] sm:$0xf] %vm2098, %v2026
      %2156 = vst.msk [vmem:[%s5 + $0xe4] sm:$0xf] %vm2098, %v2027
      %2157 = vst.msk [vmem:[%s5 + $0xe8] sm:$0xf] %vm2098, %v2028
      %2158 = vst.msk [vmem:[%s5 + $0xec] sm:$0xf] %vm2098, %v2029
      %2159 = vst.msk [vmem:[%s5 + $0xf0] sm:$0xf] %vm2098, %v2030
      %2160 = vst.msk [vmem:[%s5 + $0xf4] sm:$0xf] %vm2098, %v2031
      %2161 = vst.msk [vmem:[%s5 + $0xf8] sm:$0xf] %vm2098, %v2032
      %2162 = vst.msk [vmem:[%s5 + $0xfc] sm:$0xf] %vm2098, %v2033
    $region33: #{tpu_custom_call.1} parent=1 // pred_fallthru
      _
    // Predicated region
    $region34: #{tpu_custom_call.1} parent=1 // pred_check
      _
    $region35: #{tpu_custom_call.1} parent=1 // pred_check_branch
      %2164 = sbr.rel (0) target = $region37
    $region36: #{tpu_custom_call.1} parent=1 // pred_region
      _
    $region37: #{tpu_custom_call.1} parent=1 // pred_fallthru
      _
    // Predicated region
    $region38: #{tpu_custom_call.1} parent=1 // pred_check
      _
    $region39: #{tpu_custom_call.1} parent=1 // pred_check_branch
      %2166 = sbr.rel (0) target = $region41
    $region40: #{tpu_custom_call.1} parent=1 // pred_region
      _
    $region41: #{tpu_custom_call.1} parent=1 // pred_fallthru
      _
    %2167 = vsyncpa [#allocation4], 1

</llo_original>
